<compile_context>
chip_gen: v5e
topology: v5e:2x2
jax: 0.10.0
libtpu: 0.0.40
codegen_flags: <defaults>
</compile_context>

<pallas_src>
import math
import jax
import jax.numpy as jnp
from jax.experimental import pallas as pl
from jax.experimental.pallas import tpu as pltpu

# Small, module-consistent shapes
B, S, D = 2, 8, 32          # batch, seq_len, input_dim (= embed_dim)
H = 4                       # num_heads
HD = D // H                 # head_dim
FF = 64                     # dim_feedforward
EPS = 1e-5                  # nn.LayerNorm default eps
N = B * S                   # total rows processed in one kernel invocation
# dropout = 0.0 (module default) -> identity, so no dropout in the kernel.


def encoder_block_kernel(x_ref, wqkv_ref, bqkv_ref, wo_ref, bo_ref,
                         g1_ref, beta1_ref, w1_ref, b1_ref,
                         w2_ref, b2_ref, g2_ref, beta2_ref, out_ref):
    x = x_ref[...]                                   # (B*S, D): all rows at once
    scale = 1.0 / math.sqrt(HD)

    # ---- QKV projection over all B*S rows in a single MXU pass ----
    # wqkv columns were permuted wrapper-side to [Q | K | V] (head-contiguous).
    qkv = jnp.dot(x, wqkv_ref[...], preferred_element_type=jnp.float32) + bqkv_ref[...]
    q = qkv[:, 0 * D:1 * D]                          # (B*S, D)
    k = qkv[:, 1 * D:2 * D]
    v = qkv[:, 2 * D:3 * D]

    wo = wo_ref[...]                                 # (D, D); rows are head-major

    # ---- per-(batch, head) attention with the output projection fused in ----
    out_rows = []
    for b in range(B):                               # static unroll, B = 2
        r0, r1 = b * S, (b + 1) * S
        qb, kb, vb = q[r0:r1, :], k[r0:r1, :], v[r0:r1, :]
        acc = jnp.zeros((S, D), jnp.float32)
        for h in range(H):                           # static unroll, H = 4
            c0, c1 = h * HD, (h + 1) * HD
            qh, kh, vh = qb[:, c0:c1], kb[:, c0:c1], vb[:, c0:c1]
            # contract last dim of both operands -> no explicit kh.T
            logits = jax.lax.dot_general(
                qh, kh, (((1,), (1,)), ((), ())),
                preferred_element_type=jnp.float32) * scale
            logits = logits - jnp.max(logits, axis=-1, keepdims=True)
            p = jnp.exp(logits)
            attn = p * pl.reciprocal(jnp.sum(p, axis=-1, keepdims=True), approx=True)
            hv = jnp.dot(attn, vh, preferred_element_type=jnp.float32)       # (S, HD)
            # fused output projection: head h multiplies rows [c0:c1] of wo
            acc = acc + jnp.dot(hv, wo[c0:c1, :], preferred_element_type=jnp.float32)
        out_rows.append(acc)
    attn_out = jnp.concatenate(out_rows, axis=0) + bo_ref[...]               # (B*S, D)

    # ---- residual + LayerNorm 1 (single-pass mean / E[x^2]) ----
    x1 = x + attn_out
    mu1 = jnp.mean(x1, axis=-1, keepdims=True)
    var1 = jnp.mean(x1 * x1, axis=-1, keepdims=True) - mu1 * mu1
    x1n = (x1 - mu1) * jax.lax.rsqrt(var1 + EPS) * g1_ref[...] + beta1_ref[...]

    # ---- feed-forward: Linear -> (Dropout p=0) -> ReLU -> Linear ----
    hid = jnp.dot(x1n, w1_ref[...], preferred_element_type=jnp.float32) + b1_ref[...]
    hid = jnp.maximum(hid, 0.0)
    ff = jnp.dot(hid, w2_ref[...], preferred_element_type=jnp.float32) + b2_ref[...]

    # ---- residual + LayerNorm 2 ----
    x2 = x1n + ff
    mu2 = jnp.mean(x2, axis=-1, keepdims=True)
    var2 = jnp.mean(x2 * x2, axis=-1, keepdims=True) - mu2 * mu2
    out = (x2 - mu2) * jax.lax.rsqrt(var2 + EPS) * g2_ref[...] + beta2_ref[...]

    out_ref[...] = out.astype(out_ref.dtype)


def encoder_block_pallas(x, params):
    """x: (B, S, D) float32. params use the PyTorch-equivalent (in, out) layout."""
    # One-time column permutation (outside the kernel):
    # per-head interleaved [q_h | k_h | v_h]  ->  [Q | K | V], head-major inside each block.
    wqkv = params["wqkv"].reshape(D, H, 3, HD).transpose(0, 2, 1, 3).reshape(D, 3 * D)
    bqkv = params["bqkv"].reshape(1, H, 3, HD).transpose(0, 2, 1, 3).reshape(1, 3 * D)

    arrays = [wqkv, bqkv, params["wo"], params["bo"],
              params["g1"], params["beta1"],
              params["w1"], params["b1"], params["w2"], params["b2"],
              params["g2"], params["beta2"]]

    x2d = x.reshape(N, D)                            # all B*S rows in one block

    vmem = pl.BlockSpec(memory_space=pltpu.MemorySpace.VMEM)   # whole-array, resident
    out2d = pl.pallas_call(
        encoder_block_kernel,
        out_shape=jax.ShapeDtypeStruct((N, D), x.dtype),
        in_specs=[vmem] * (1 + len(arrays)),
        out_specs=vmem,
    )(x2d, *arrays)

    return out2d.reshape(B, S, D)


# ---- pure-JAX reference (mirrors the PyTorch forward exactly) ----
def encoder_block_ref(x, p):
    # qkv_proj output features are per-head interleaved, exactly like the module's
    # reshape(B, S, H, 3*HD) + chunk(3) implies.
    qkv = x @ p["wqkv"] + p["bqkv"]                              # (B, S, 3D)
    qkv = qkv.reshape(B, S, H, 3 * HD).transpose(0, 2, 1, 3)     # (B, H, S, 3HD)
    q, k, v = qkv[..., :HD], qkv[..., HD:2 * HD], qkv[..., 2 * HD:]
    logits = jnp.einsum("bhqd,bhkd->bhqk", q, k) / math.sqrt(HD)
    attn = jax.nn.softmax(logits, axis=-1)
    vals = jnp.einsum("bhqk,bhkd->bhqd", attn, v)
    vals = vals.transpose(0, 2, 1, 3).reshape(B, S, D)
    o = vals @ p["wo"] + p["bo"]

    def ln(z, g, b):
        mu = jnp.mean(z, axis=-1, keepdims=True)
        var = jnp.mean((z - mu) ** 2, axis=-1, keepdims=True)
        return (z - mu) * jax.lax.rsqrt(var + EPS) * g + b

    x1 = ln(x + o, p["g1"], p["beta1"])
    ff = jnp.maximum(x1 @ p["w1"] + p["b1"], 0.0) @ p["w2"] + p["b2"]
    return ln(x1 + ff, p["g2"], p["beta2"])


def xavier_uniform(key, shape):
    fan_in, fan_out = shape
    limit = math.sqrt(6.0 / (fan_in + fan_out))
    return jax.random.uniform(key, shape, jnp.float32, -limit, limit)


if __name__ == "__main__":
    key = jax.random.PRNGKey(0)
    kx, k0, k1, k2, k3, k4, k5 = jax.random.split(key, 7)

    x = jax.random.normal(kx, (B, S, D), jnp.float32)

    params = {
        # attention (qkv/o biases are zero, matching _reset_parameters)
        "wqkv": xavier_uniform(k0, (D, 3 * D)),
        "bqkv": jnp.zeros((1, 3 * D), jnp.float32),
        "wo": xavier_uniform(k1, (D, D)),
        "bo": jnp.zeros((1, D), jnp.float32),
        # layernorm 1
        "g1": jnp.ones((1, D), jnp.float32),
        "beta1": jnp.zeros((1, D), jnp.float32),
        # feed-forward (biases get small deterministic non-zero values)
        "w1": xavier_uniform(k2, (D, FF)),
        "b1": jax.random.uniform(k3, (1, FF), jnp.float32, -0.1, 0.1),
        "w2": xavier_uniform(k4, (FF, D)),
        "b2": jax.random.uniform(k5, (1, D), jnp.float32, -0.1, 0.1),
        # layernorm 2
        "g2": jnp.ones((1, D), jnp.float32),
        "beta2": jnp.zeros((1, D), jnp.float32),
    }

    out = jax.block_until_ready(encoder_block_pallas(x, params))
    ref = jax.block_until_ready(encoder_block_ref(x, params))

    assert out.shape == (B, S, D)
    # slightly relaxed tolerance: softmax denominator uses the EUP approximate
    # reciprocal (pl.reciprocal(approx=True)) inside the kernel.
    assert jnp.allclose(out, ref, rtol=2e-3, atol=2e-3), "Pallas output mismatch vs JAX reference"
    print("KERNEL_OK")
</pallas_src>

<mosaic_0001>
module attributes {stable_mosaic.version = 11 : i64} {
  func.func @encoder_block_kernel(%arg0: memref<16x32xf32, #tpu.memory_space<vmem>>, %arg1: memref<32x96xf32, #tpu.memory_space<vmem>>, %arg2: memref<1x96xf32, #tpu.memory_space<vmem>>, %arg3: memref<32x32xf32, #tpu.memory_space<vmem>>, %arg4: memref<1x32xf32, #tpu.memory_space<vmem>>, %arg5: memref<1x32xf32, #tpu.memory_space<vmem>>, %arg6: memref<1x32xf32, #tpu.memory_space<vmem>>, %arg7: memref<32x64xf32, #tpu.memory_space<vmem>>, %arg8: memref<1x64xf32, #tpu.memory_space<vmem>>, %arg9: memref<64x32xf32, #tpu.memory_space<vmem>>, %arg10: memref<1x32xf32, #tpu.memory_space<vmem>>, %arg11: memref<1x32xf32, #tpu.memory_space<vmem>>, %arg12: memref<1x32xf32, #tpu.memory_space<vmem>>, %arg13: memref<16x32xf32, #tpu.memory_space<vmem>>) attributes {dimension_semantics = [], scalar_prefetch = 0 : i64, scratch_operands = 0 : i64, tpu.core_type = #tpu.core_type<tc>} {
    %c0 = arith.constant 0 : index
    %c0_0 = arith.constant 0 : index
    %0 = vector.load %arg0[%c0, %c0_0] : memref<16x32xf32, #tpu.memory_space<vmem>>, vector<16x32xf32>
    %c0_1 = arith.constant 0 : index
    %c0_2 = arith.constant 0 : index
    %1 = vector.load %arg1[%c0_1, %c0_2] : memref<32x96xf32, #tpu.memory_space<vmem>>, vector<32x96xf32>
    %cst = arith.constant dense<0.000000e+00> : vector<16x96xf32>
    %2 = tpu.matmul %0, %1, %cst {dimension_numbers = #tpu.dot_dimension_numbers<[1], [0], [0], [1], [0, 0, 1, 1], [], []>} : vector<16x32xf32>, vector<32x96xf32>, vector<16x96xf32> -> vector<16x96xf32>
    %c0_3 = arith.constant 0 : index
    %c0_4 = arith.constant 0 : index
    %3 = vector.load %arg2[%c0_3, %c0_4] : memref<1x96xf32, #tpu.memory_space<vmem>>, vector<1x96xf32>
    %4 = vector.broadcast %3 : vector<1x96xf32> to vector<16x96xf32>
    %5 = arith.addf %2, %4 : vector<16x96xf32>
    %6 = vector.extract_strided_slice %5 {offsets = [0, 0], sizes = [16, 32], strides = [1, 1]} : vector<16x96xf32> to vector<16x32xf32>
    %7 = vector.extract_strided_slice %5 {offsets = [0, 32], sizes = [16, 32], strides = [1, 1]} : vector<16x96xf32> to vector<16x32xf32>
    %8 = vector.extract_strided_slice %5 {offsets = [0, 64], sizes = [16, 32], strides = [1, 1]} : vector<16x96xf32> to vector<16x32xf32>
    %c0_5 = arith.constant 0 : index
    %c0_6 = arith.constant 0 : index
    %9 = vector.load %arg3[%c0_5, %c0_6] : memref<32x32xf32, #tpu.memory_space<vmem>>, vector<32x32xf32>
    %10 = vector.extract_strided_slice %6 {offsets = [0, 0], sizes = [8, 32], strides = [1, 1]} : vector<16x32xf32> to vector<8x32xf32>
    %11 = vector.extract_strided_slice %7 {offsets = [0, 0], sizes = [8, 32], strides = [1, 1]} : vector<16x32xf32> to vector<8x32xf32>
    %12 = vector.extract_strided_slice %8 {offsets = [0, 0], sizes = [8, 32], strides = [1, 1]} : vector<16x32xf32> to vector<8x32xf32>
    %cst_7 = arith.constant 0.000000e+00 : f32
    %13 = vector.broadcast %cst_7 : f32 to vector<8x32xf32>
    %14 = vector.extract_strided_slice %10 {offsets = [0, 0], sizes = [8, 8], strides = [1, 1]} : vector<8x32xf32> to vector<8x8xf32>
    %15 = vector.extract_strided_slice %11 {offsets = [0, 0], sizes = [8, 8], strides = [1, 1]} : vector<8x32xf32> to vector<8x8xf32>
    %16 = vector.extract_strided_slice %12 {offsets = [0, 0], sizes = [8, 8], strides = [1, 1]} : vector<8x32xf32> to vector<8x8xf32>
    %cst_8 = arith.constant dense<0.000000e+00> : vector<8x8xf32>
    %17 = tpu.matmul %14, %15, %cst_8 {dimension_numbers = #tpu.dot_dimension_numbers<[1], [1], [0], [0], [0, 0, 1, 0], [], []>} : vector<8x8xf32>, vector<8x8xf32>, vector<8x8xf32> -> vector<8x8xf32>
    %cst_9 = arith.constant 0.353553385 : f32
    %18 = vector.broadcast %cst_9 : f32 to vector<8x8xf32>
    %19 = arith.mulf %17, %18 : vector<8x8xf32>
    %cst_10 = arith.constant dense<0xFF800000> : vector<8xf32>
    %20 = vector.multi_reduction <maximumf>, %19, %cst_10 [1] : vector<8x8xf32> to vector<8xf32>
    %21 = vector.shape_cast %20 : vector<8xf32> to vector<8x1xf32>
    %22 = vector.broadcast %21 : vector<8x1xf32> to vector<8x8xf32>
    %23 = arith.subf %19, %22 : vector<8x8xf32>
    %24 = math.exp %23 : vector<8x8xf32>
    %cst_11 = arith.constant dense<0.000000e+00> : vector<8xf32>
    %25 = vector.multi_reduction <add>, %24, %cst_11 [1] : vector<8x8xf32> to vector<8xf32>
    %26 = vector.shape_cast %25 : vector<8xf32> to vector<8x1xf32>
    %27 = tpu.reciprocal %26 {approx = true} : vector<8x1xf32> -> vector<8x1xf32>
    %28 = vector.broadcast %27 : vector<8x1xf32> to vector<8x8xf32>
    %29 = arith.mulf %24, %28 : vector<8x8xf32>
    %cst_12 = arith.constant dense<0.000000e+00> : vector<8x8xf32>
    %30 = tpu.matmul %29, %16, %cst_12 {dimension_numbers = #tpu.dot_dimension_numbers<[1], [0], [0], [1], [0, 0, 1, 1], [], []>} : vector<8x8xf32>, vector<8x8xf32>, vector<8x8xf32> -> vector<8x8xf32>
    %31 = vector.extract_strided_slice %9 {offsets = [0, 0], sizes = [8, 32], strides = [1, 1]} : vector<32x32xf32> to vector<8x32xf32>
    %cst_13 = arith.constant dense<0.000000e+00> : vector<8x32xf32>
    %32 = tpu.matmul %30, %31, %cst_13 {dimension_numbers = #tpu.dot_dimension_numbers<[1], [0], [0], [1], [0, 0, 1, 1], [], []>} : vector<8x8xf32>, vector<8x32xf32>, vector<8x32xf32> -> vector<8x32xf32>
    %33 = arith.addf %13, %32 : vector<8x32xf32>
    %34 = vector.extract_strided_slice %10 {offsets = [0, 8], sizes = [8, 8], strides = [1, 1]} : vector<8x32xf32> to vector<8x8xf32>
    %35 = vector.extract_strided_slice %11 {offsets = [0, 8], sizes = [8, 8], strides = [1, 1]} : vector<8x32xf32> to vector<8x8xf32>
    %36 = vector.extract_strided_slice %12 {offsets = [0, 8], sizes = [8, 8], strides = [1, 1]} : vector<8x32xf32> to vector<8x8xf32>
    %cst_14 = arith.constant dense<0.000000e+00> : vector<8x8xf32>
    %37 = tpu.matmul %34, %35, %cst_14 {dimension_numbers = #tpu.dot_dimension_numbers<[1], [1], [0], [0], [0, 0, 1, 0], [], []>} : vector<8x8xf32>, vector<8x8xf32>, vector<8x8xf32> -> vector<8x8xf32>
    %cst_15 = arith.constant 0.353553385 : f32
    %38 = vector.broadcast %cst_15 : f32 to vector<8x8xf32>
    %39 = arith.mulf %37, %38 : vector<8x8xf32>
    %cst_16 = arith.constant dense<0xFF800000> : vector<8xf32>
    %40 = vector.multi_reduction <maximumf>, %39, %cst_16 [1] : vector<8x8xf32> to vector<8xf32>
    %41 = vector.shape_cast %40 : vector<8xf32> to vector<8x1xf32>
    %42 = vector.broadcast %41 : vector<8x1xf32> to vector<8x8xf32>
    %43 = arith.subf %39, %42 : vector<8x8xf32>
    %44 = math.exp %43 : vector<8x8xf32>
    %cst_17 = arith.constant dense<0.000000e+00> : vector<8xf32>
    %45 = vector.multi_reduction <add>, %44, %cst_17 [1] : vector<8x8xf32> to vector<8xf32>
    %46 = vector.shape_cast %45 : vector<8xf32> to vector<8x1xf32>
    %47 = tpu.reciprocal %46 {approx = true} : vector<8x1xf32> -> vector<8x1xf32>
    %48 = vector.broadcast %47 : vector<8x1xf32> to vector<8x8xf32>
    %49 = arith.mulf %44, %48 : vector<8x8xf32>
    %cst_18 = arith.constant dense<0.000000e+00> : vector<8x8xf32>
    %50 = tpu.matmul %49, %36, %cst_18 {dimension_numbers = #tpu.dot_dimension_numbers<[1], [0], [0], [1], [0, 0, 1, 1], [], []>} : vector<8x8xf32>, vector<8x8xf32>, vector<8x8xf32> -> vector<8x8xf32>
    %51 = vector.extract_strided_slice %9 {offsets = [8, 0], sizes = [8, 32], strides = [1, 1]} : vector<32x32xf32> to vector<8x32xf32>
    %cst_19 = arith.constant dense<0.000000e+00> : vector<8x32xf32>
    %52 = tpu.matmul %50, %51, %cst_19 {dimension_numbers = #tpu.dot_dimension_numbers<[1], [0], [0], [1], [0, 0, 1, 1], [], []>} : vector<8x8xf32>, vector<8x32xf32>, vector<8x32xf32> -> vector<8x32xf32>
    %53 = arith.addf %33, %52 : vector<8x32xf32>
    %54 = vector.extract_strided_slice %10 {offsets = [0, 16], sizes = [8, 8], strides = [1, 1]} : vector<8x32xf32> to vector<8x8xf32>
    %55 = vector.extract_strided_slice %11 {offsets = [0, 16], sizes = [8, 8], strides = [1, 1]} : vector<8x32xf32> to vector<8x8xf32>
    %56 = vector.extract_strided_slice %12 {offsets = [0, 16], sizes = [8, 8], strides = [1, 1]} : vector<8x32xf32> to vector<8x8xf32>
    %cst_20 = arith.constant dense<0.000000e+00> : vector<8x8xf32>
    %57 = tpu.matmul %54, %55, %cst_20 {dimension_numbers = #tpu.dot_dimension_numbers<[1], [1], [0], [0], [0, 0, 1, 0], [], []>} : vector<8x8xf32>, vector<8x8xf32>, vector<8x8xf32> -> vector<8x8xf32>
    %cst_21 = arith.constant 0.353553385 : f32
    %58 = vector.broadcast %cst_21 : f32 to vector<8x8xf32>
    %59 = arith.mulf %57, %58 : vector<8x8xf32>
    %cst_22 = arith.constant dense<0xFF800000> : vector<8xf32>
    %60 = vector.multi_reduction <maximumf>, %59, %cst_22 [1] : vector<8x8xf32> to vector<8xf32>
    %61 = vector.shape_cast %60 : vector<8xf32> to vector<8x1xf32>
    %62 = vector.broadcast %61 : vector<8x1xf32> to vector<8x8xf32>
    %63 = arith.subf %59, %62 : vector<8x8xf32>
    %64 = math.exp %63 : vector<8x8xf32>
    %cst_23 = arith.constant dense<0.000000e+00> : vector<8xf32>
    %65 = vector.multi_reduction <add>, %64, %cst_23 [1] : vector<8x8xf32> to vector<8xf32>
    %66 = vector.shape_cast %65 : vector<8xf32> to vector<8x1xf32>
    %67 = tpu.reciprocal %66 {approx = true} : vector<8x1xf32> -> vector<8x1xf32>
    %68 = vector.broadcast %67 : vector<8x1xf32> to vector<8x8xf32>
    %69 = arith.mulf %64, %68 : vector<8x8xf32>
    %cst_24 = arith.constant dense<0.000000e+00> : vector<8x8xf32>
    %70 = tpu.matmul %69, %56, %cst_24 {dimension_numbers = #tpu.dot_dimension_numbers<[1], [0], [0], [1], [0, 0, 1, 1], [], []>} : vector<8x8xf32>, vector<8x8xf32>, vector<8x8xf32> -> vector<8x8xf32>
    %71 = vector.extract_strided_slice %9 {offsets = [16, 0], sizes = [8, 32], strides = [1, 1]} : vector<32x32xf32> to vector<8x32xf32>
    %cst_25 = arith.constant dense<0.000000e+00> : vector<8x32xf32>
    %72 = tpu.matmul %70, %71, %cst_25 {dimension_numbers = #tpu.dot_dimension_numbers<[1], [0], [0], [1], [0, 0, 1, 1], [], []>} : vector<8x8xf32>, vector<8x32xf32>, vector<8x32xf32> -> vector<8x32xf32>
    %73 = arith.addf %53, %72 : vector<8x32xf32>
    %74 = vector.extract_strided_slice %10 {offsets = [0, 24], sizes = [8, 8], strides = [1, 1]} : vector<8x32xf32> to vector<8x8xf32>
    %75 = vector.extract_strided_slice %11 {offsets = [0, 24], sizes = [8, 8], strides = [1, 1]} : vector<8x32xf32> to vector<8x8xf32>
    %76 = vector.extract_strided_slice %12 {offsets = [0, 24], sizes = [8, 8], strides = [1, 1]} : vector<8x32xf32> to vector<8x8xf32>
    %cst_26 = arith.constant dense<0.000000e+00> : vector<8x8xf32>
    %77 = tpu.matmul %74, %75, %cst_26 {dimension_numbers = #tpu.dot_dimension_numbers<[1], [1], [0], [0], [0, 0, 1, 0], [], []>} : vector<8x8xf32>, vector<8x8xf32>, vector<8x8xf32> -> vector<8x8xf32>
    %cst_27 = arith.constant 0.353553385 : f32
    %78 = vector.broadcast %cst_27 : f32 to vector<8x8xf32>
    %79 = arith.mulf %77, %78 : vector<8x8xf32>
    %cst_28 = arith.constant dense<0xFF800000> : vector<8xf32>
    %80 = vector.multi_reduction <maximumf>, %79, %cst_28 [1] : vector<8x8xf32> to vector<8xf32>
    %81 = vector.shape_cast %80 : vector<8xf32> to vector<8x1xf32>
    %82 = vector.broadcast %81 : vector<8x1xf32> to vector<8x8xf32>
    %83 = arith.subf %79, %82 : vector<8x8xf32>
    %84 = math.exp %83 : vector<8x8xf32>
    %cst_29 = arith.constant dense<0.000000e+00> : vector<8xf32>
    %85 = vector.multi_reduction <add>, %84, %cst_29 [1] : vector<8x8xf32> to vector<8xf32>
    %86 = vector.shape_cast %85 : vector<8xf32> to vector<8x1xf32>
    %87 = tpu.reciprocal %86 {approx = true} : vector<8x1xf32> -> vector<8x1xf32>
    %88 = vector.broadcast %87 : vector<8x1xf32> to vector<8x8xf32>
    %89 = arith.mulf %84, %88 : vector<8x8xf32>
    %cst_30 = arith.constant dense<0.000000e+00> : vector<8x8xf32>
    %90 = tpu.matmul %89, %76, %cst_30 {dimension_numbers = #tpu.dot_dimension_numbers<[1], [0], [0], [1], [0, 0, 1, 1], [], []>} : vector<8x8xf32>, vector<8x8xf32>, vector<8x8xf32> -> vector<8x8xf32>
    %91 = vector.extract_strided_slice %9 {offsets = [24, 0], sizes = [8, 32], strides = [1, 1]} : vector<32x32xf32> to vector<8x32xf32>
    %cst_31 = arith.constant dense<0.000000e+00> : vector<8x32xf32>
    %92 = tpu.matmul %90, %91, %cst_31 {dimension_numbers = #tpu.dot_dimension_numbers<[1], [0], [0], [1], [0, 0, 1, 1], [], []>} : vector<8x8xf32>, vector<8x32xf32>, vector<8x32xf32> -> vector<8x32xf32>
    %93 = arith.addf %73, %92 : vector<8x32xf32>
    %94 = vector.extract_strided_slice %6 {offsets = [8, 0], sizes = [8, 32], strides = [1, 1]} : vector<16x32xf32> to vector<8x32xf32>
    %95 = vector.extract_strided_slice %7 {offsets = [8, 0], sizes = [8, 32], strides = [1, 1]} : vector<16x32xf32> to vector<8x32xf32>
    %96 = vector.extract_strided_slice %8 {offsets = [8, 0], sizes = [8, 32], strides = [1, 1]} : vector<16x32xf32> to vector<8x32xf32>
    %cst_32 = arith.constant 0.000000e+00 : f32
    %97 = vector.broadcast %cst_32 : f32 to vector<8x32xf32>
    %98 = vector.extract_strided_slice %94 {offsets = [0, 0], sizes = [8, 8], strides = [1, 1]} : vector<8x32xf32> to vector<8x8xf32>
    %99 = vector.extract_strided_slice %95 {offsets = [0, 0], sizes = [8, 8], strides = [1, 1]} : vector<8x32xf32> to vector<8x8xf32>
    %100 = vector.extract_strided_slice %96 {offsets = [0, 0], sizes = [8, 8], strides = [1, 1]} : vector<8x32xf32> to vector<8x8xf32>
    %cst_33 = arith.constant dense<0.000000e+00> : vector<8x8xf32>
    %101 = tpu.matmul %98, %99, %cst_33 {dimension_numbers = #tpu.dot_dimension_numbers<[1], [1], [0], [0], [0, 0, 1, 0], [], []>} : vector<8x8xf32>, vector<8x8xf32>, vector<8x8xf32> -> vector<8x8xf32>
    %cst_34 = arith.constant 0.353553385 : f32
    %102 = vector.broadcast %cst_34 : f32 to vector<8x8xf32>
    %103 = arith.mulf %101, %102 : vector<8x8xf32>
    %cst_35 = arith.constant dense<0xFF800000> : vector<8xf32>
    %104 = vector.multi_reduction <maximumf>, %103, %cst_35 [1] : vector<8x8xf32> to vector<8xf32>
    %105 = vector.shape_cast %104 : vector<8xf32> to vector<8x1xf32>
    %106 = vector.broadcast %105 : vector<8x1xf32> to vector<8x8xf32>
    %107 = arith.subf %103, %106 : vector<8x8xf32>
    %108 = math.exp %107 : vector<8x8xf32>
    %cst_36 = arith.constant dense<0.000000e+00> : vector<8xf32>
    %109 = vector.multi_reduction <add>, %108, %cst_36 [1] : vector<8x8xf32> to vector<8xf32>
    %110 = vector.shape_cast %109 : vector<8xf32> to vector<8x1xf32>
    %111 = tpu.reciprocal %110 {approx = true} : vector<8x1xf32> -> vector<8x1xf32>
    %112 = vector.broadcast %111 : vector<8x1xf32> to vector<8x8xf32>
    %113 = arith.mulf %108, %112 : vector<8x8xf32>
    %cst_37 = arith.constant dense<0.000000e+00> : vector<8x8xf32>
    %114 = tpu.matmul %113, %100, %cst_37 {dimension_numbers = #tpu.dot_dimension_numbers<[1], [0], [0], [1], [0, 0, 1, 1], [], []>} : vector<8x8xf32>, vector<8x8xf32>, vector<8x8xf32> -> vector<8x8xf32>
    %115 = vector.extract_strided_slice %9 {offsets = [0, 0], sizes = [8, 32], strides = [1, 1]} : vector<32x32xf32> to vector<8x32xf32>
    %cst_38 = arith.constant dense<0.000000e+00> : vector<8x32xf32>
    %116 = tpu.matmul %114, %115, %cst_38 {dimension_numbers = #tpu.dot_dimension_numbers<[1], [0], [0], [1], [0, 0, 1, 1], [], []>} : vector<8x8xf32>, vector<8x32xf32>, vector<8x32xf32> -> vector<8x32xf32>
    %117 = arith.addf %97, %116 : vector<8x32xf32>
    %118 = vector.extract_strided_slice %94 {offsets = [0, 8], sizes = [8, 8], strides = [1, 1]} : vector<8x32xf32> to vector<8x8xf32>
    %119 = vector.extract_strided_slice %95 {offsets = [0, 8], sizes = [8, 8], strides = [1, 1]} : vector<8x32xf32> to vector<8x8xf32>
    %120 = vector.extract_strided_slice %96 {offsets = [0, 8], sizes = [8, 8], strides = [1, 1]} : vector<8x32xf32> to vector<8x8xf32>
    %cst_39 = arith.constant dense<0.000000e+00> : vector<8x8xf32>
    %121 = tpu.matmul %118, %119, %cst_39 {dimension_numbers = #tpu.dot_dimension_numbers<[1], [1], [0], [0], [0, 0, 1, 0], [], []>} : vector<8x8xf32>, vector<8x8xf32>, vector<8x8xf32> -> vector<8x8xf32>
    %cst_40 = arith.constant 0.353553385 : f32
    %122 = vector.broadcast %cst_40 : f32 to vector<8x8xf32>
    %123 = arith.mulf %121, %122 : vector<8x8xf32>
    %cst_41 = arith.constant dense<0xFF800000> : vector<8xf32>
    %124 = vector.multi_reduction <maximumf>, %123, %cst_41 [1] : vector<8x8xf32> to vector<8xf32>
    %125 = vector.shape_cast %124 : vector<8xf32> to vector<8x1xf32>
    %126 = vector.broadcast %125 : vector<8x1xf32> to vector<8x8xf32>
    %127 = arith.subf %123, %126 : vector<8x8xf32>
    %128 = math.exp %127 : vector<8x8xf32>
    %cst_42 = arith.constant dense<0.000000e+00> : vector<8xf32>
    %129 = vector.multi_reduction <add>, %128, %cst_42 [1] : vector<8x8xf32> to vector<8xf32>
    %130 = vector.shape_cast %129 : vector<8xf32> to vector<8x1xf32>
    %131 = tpu.reciprocal %130 {approx = true} : vector<8x1xf32> -> vector<8x1xf32>
    %132 = vector.broadcast %131 : vector<8x1xf32> to vector<8x8xf32>
    %133 = arith.mulf %128, %132 : vector<8x8xf32>
    %cst_43 = arith.constant dense<0.000000e+00> : vector<8x8xf32>
    %134 = tpu.matmul %133, %120, %cst_43 {dimension_numbers = #tpu.dot_dimension_numbers<[1], [0], [0], [1], [0, 0, 1, 1], [], []>} : vector<8x8xf32>, vector<8x8xf32>, vector<8x8xf32> -> vector<8x8xf32>
    %135 = vector.extract_strided_slice %9 {offsets = [8, 0], sizes = [8, 32], strides = [1, 1]} : vector<32x32xf32> to vector<8x32xf32>
    %cst_44 = arith.constant dense<0.000000e+00> : vector<8x32xf32>
    %136 = tpu.matmul %134, %135, %cst_44 {dimension_numbers = #tpu.dot_dimension_numbers<[1], [0], [0], [1], [0, 0, 1, 1], [], []>} : vector<8x8xf32>, vector<8x32xf32>, vector<8x32xf32> -> vector<8x32xf32>
    %137 = arith.addf %117, %136 : vector<8x32xf32>
    %138 = vector.extract_strided_slice %94 {offsets = [0, 16], sizes = [8, 8], strides = [1, 1]} : vector<8x32xf32> to vector<8x8xf32>
    %139 = vector.extract_strided_slice %95 {offsets = [0, 16], sizes = [8, 8], strides = [1, 1]} : vector<8x32xf32> to vector<8x8xf32>
    %140 = vector.extract_strided_slice %96 {offsets = [0, 16], sizes = [8, 8], strides = [1, 1]} : vector<8x32xf32> to vector<8x8xf32>
    %cst_45 = arith.constant dense<0.000000e+00> : vector<8x8xf32>
    %141 = tpu.matmul %138, %139, %cst_45 {dimension_numbers = #tpu.dot_dimension_numbers<[1], [1], [0], [0], [0, 0, 1, 0], [], []>} : vector<8x8xf32>, vector<8x8xf32>, vector<8x8xf32> -> vector<8x8xf32>
    %cst_46 = arith.constant 0.353553385 : f32
    %142 = vector.broadcast %cst_46 : f32 to vector<8x8xf32>
    %143 = arith.mulf %141, %142 : vector<8x8xf32>
    %cst_47 = arith.constant dense<0xFF800000> : vector<8xf32>
    %144 = vector.multi_reduction <maximumf>, %143, %cst_47 [1] : vector<8x8xf32> to vector<8xf32>
    %145 = vector.shape_cast %144 : vector<8xf32> to vector<8x1xf32>
    %146 = vector.broadcast %145 : vector<8x1xf32> to vector<8x8xf32>
    %147 = arith.subf %143, %146 : vector<8x8xf32>
    %148 = math.exp %147 : vector<8x8xf32>
    %cst_48 = arith.constant dense<0.000000e+00> : vector<8xf32>
    %149 = vector.multi_reduction <add>, %148, %cst_48 [1] : vector<8x8xf32> to vector<8xf32>
    %150 = vector.shape_cast %149 : vector<8xf32> to vector<8x1xf32>
    %151 = tpu.reciprocal %150 {approx = true} : vector<8x1xf32> -> vector<8x1xf32>
    %152 = vector.broadcast %151 : vector<8x1xf32> to vector<8x8xf32>
    %153 = arith.mulf %148, %152 : vector<8x8xf32>
    %cst_49 = arith.constant dense<0.000000e+00> : vector<8x8xf32>
    %154 = tpu.matmul %153, %140, %cst_49 {dimension_numbers = #tpu.dot_dimension_numbers<[1], [0], [0], [1], [0, 0, 1, 1], [], []>} : vector<8x8xf32>, vector<8x8xf32>, vector<8x8xf32> -> vector<8x8xf32>
    %155 = vector.extract_strided_slice %9 {offsets = [16, 0], sizes = [8, 32], strides = [1, 1]} : vector<32x32xf32> to vector<8x32xf32>
    %cst_50 = arith.constant dense<0.000000e+00> : vector<8x32xf32>
    %156 = tpu.matmul %154, %155, %cst_50 {dimension_numbers = #tpu.dot_dimension_numbers<[1], [0], [0], [1], [0, 0, 1, 1], [], []>} : vector<8x8xf32>, vector<8x32xf32>, vector<8x32xf32> -> vector<8x32xf32>
    %157 = arith.addf %137, %156 : vector<8x32xf32>
    %158 = vector.extract_strided_slice %94 {offsets = [0, 24], sizes = [8, 8], strides = [1, 1]} : vector<8x32xf32> to vector<8x8xf32>
    %159 = vector.extract_strided_slice %95 {offsets = [0, 24], sizes = [8, 8], strides = [1, 1]} : vector<8x32xf32> to vector<8x8xf32>
    %160 = vector.extract_strided_slice %96 {offsets = [0, 24], sizes = [8, 8], strides = [1, 1]} : vector<8x32xf32> to vector<8x8xf32>
    %cst_51 = arith.constant dense<0.000000e+00> : vector<8x8xf32>
    %161 = tpu.matmul %158, %159, %cst_51 {dimension_numbers = #tpu.dot_dimension_numbers<[1], [1], [0], [0], [0, 0, 1, 0], [], []>} : vector<8x8xf32>, vector<8x8xf32>, vector<8x8xf32> -> vector<8x8xf32>
    %cst_52 = arith.constant 0.353553385 : f32
    %162 = vector.broadcast %cst_52 : f32 to vector<8x8xf32>
    %163 = arith.mulf %161, %162 : vector<8x8xf32>
    %cst_53 = arith.constant dense<0xFF800000> : vector<8xf32>
    %164 = vector.multi_reduction <maximumf>, %163, %cst_53 [1] : vector<8x8xf32> to vector<8xf32>
    %165 = vector.shape_cast %164 : vector<8xf32> to vector<8x1xf32>
    %166 = vector.broadcast %165 : vector<8x1xf32> to vector<8x8xf32>
    %167 = arith.subf %163, %166 : vector<8x8xf32>
    %168 = math.exp %167 : vector<8x8xf32>
    %cst_54 = arith.constant dense<0.000000e+00> : vector<8xf32>
    %169 = vector.multi_reduction <add>, %168, %cst_54 [1] : vector<8x8xf32> to vector<8xf32>
    %170 = vector.shape_cast %169 : vector<8xf32> to vector<8x1xf32>
    %171 = tpu.reciprocal %170 {approx = true} : vector<8x1xf32> -> vector<8x1xf32>
    %172 = vector.broadcast %171 : vector<8x1xf32> to vector<8x8xf32>
    %173 = arith.mulf %168, %172 : vector<8x8xf32>
    %cst_55 = arith.constant dense<0.000000e+00> : vector<8x8xf32>
    %174 = tpu.matmul %173, %160, %cst_55 {dimension_numbers = #tpu.dot_dimension_numbers<[1], [0], [0], [1], [0, 0, 1, 1], [], []>} : vector<8x8xf32>, vector<8x8xf32>, vector<8x8xf32> -> vector<8x8xf32>
    %175 = vector.extract_strided_slice %9 {offsets = [24, 0], sizes = [8, 32], strides = [1, 1]} : vector<32x32xf32> to vector<8x32xf32>
    %cst_56 = arith.constant dense<0.000000e+00> : vector<8x32xf32>
    %176 = tpu.matmul %174, %175, %cst_56 {dimension_numbers = #tpu.dot_dimension_numbers<[1], [0], [0], [1], [0, 0, 1, 1], [], []>} : vector<8x8xf32>, vector<8x32xf32>, vector<8x32xf32> -> vector<8x32xf32>
    %177 = arith.addf %157, %176 : vector<8x32xf32>
    %178 = tpu.concatenate %93, %177 in 0 : vector<8x32xf32>, vector<8x32xf32> -> vector<16x32xf32>
    %c0_57 = arith.constant 0 : index
    %c0_58 = arith.constant 0 : index
    %179 = vector.load %arg4[%c0_57, %c0_58] : memref<1x32xf32, #tpu.memory_space<vmem>>, vector<1x32xf32>
    %180 = vector.broadcast %179 : vector<1x32xf32> to vector<16x32xf32>
    %181 = arith.addf %178, %180 : vector<16x32xf32>
    %182 = arith.addf %0, %181 : vector<16x32xf32>
    %cst_59 = arith.constant dense<0.000000e+00> : vector<16xf32>
    %183 = vector.multi_reduction <add>, %182, %cst_59 [1] : vector<16x32xf32> to vector<16xf32>
    %184 = vector.shape_cast %183 : vector<16xf32> to vector<16x1xf32>
    %cst_60 = arith.constant 3.200000e+01 : f32
    %185 = vector.broadcast %cst_60 : f32 to vector<16x1xf32>
    %186 = arith.divf %184, %185 : vector<16x1xf32>
    %187 = arith.mulf %182, %182 : vector<16x32xf32>
    %cst_61 = arith.constant dense<0.000000e+00> : vector<16xf32>
    %188 = vector.multi_reduction <add>, %187, %cst_61 [1] : vector<16x32xf32> to vector<16xf32>
    %189 = vector.shape_cast %188 : vector<16xf32> to vector<16x1xf32>
    %cst_62 = arith.constant 3.200000e+01 : f32
    %190 = vector.broadcast %cst_62 : f32 to vector<16x1xf32>
    %191 = arith.divf %189, %190 : vector<16x1xf32>
    %192 = arith.mulf %186, %186 : vector<16x1xf32>
    %193 = arith.subf %191, %192 : vector<16x1xf32>
    %194 = vector.broadcast %186 : vector<16x1xf32> to vector<16x32xf32>
    %195 = arith.subf %182, %194 : vector<16x32xf32>
    %cst_63 = arith.constant 9.99999974E-6 : f32
    %196 = vector.broadcast %cst_63 : f32 to vector<16x1xf32>
    %197 = arith.addf %193, %196 : vector<16x1xf32>
    %198 = math.rsqrt %197 : vector<16x1xf32>
    %199 = vector.broadcast %198 : vector<16x1xf32> to vector<16x32xf32>
    %200 = arith.mulf %195, %199 : vector<16x32xf32>
    %c0_64 = arith.constant 0 : index
    %c0_65 = arith.constant 0 : index
    %201 = vector.load %arg5[%c0_64, %c0_65] : memref<1x32xf32, #tpu.memory_space<vmem>>, vector<1x32xf32>
    %202 = vector.broadcast %201 : vector<1x32xf32> to vector<16x32xf32>
    %203 = arith.mulf %200, %202 : vector<16x32xf32>
    %c0_66 = arith.constant 0 : index
    %c0_67 = arith.constant 0 : index
    %204 = vector.load %arg6[%c0_66, %c0_67] : memref<1x32xf32, #tpu.memory_space<vmem>>, vector<1x32xf32>
    %205 = vector.broadcast %204 : vector<1x32xf32> to vector<16x32xf32>
    %206 = arith.addf %203, %205 : vector<16x32xf32>
    %c0_68 = arith.constant 0 : index
    %c0_69 = arith.constant 0 : index
    %207 = vector.load %arg7[%c0_68, %c0_69] : memref<32x64xf32, #tpu.memory_space<vmem>>, vector<32x64xf32>
    %cst_70 = arith.constant dense<0.000000e+00> : vector<16x64xf32>
    %208 = tpu.matmul %206, %207, %cst_70 {dimension_numbers = #tpu.dot_dimension_numbers<[1], [0], [0], [1], [0, 0, 1, 1], [], []>} : vector<16x32xf32>, vector<32x64xf32>, vector<16x64xf32> -> vector<16x64xf32>
    %c0_71 = arith.constant 0 : index
    %c0_72 = arith.constant 0 : index
    %209 = vector.load %arg8[%c0_71, %c0_72] : memref<1x64xf32, #tpu.memory_space<vmem>>, vector<1x64xf32>
    %210 = vector.broadcast %209 : vector<1x64xf32> to vector<16x64xf32>
    %211 = arith.addf %208, %210 : vector<16x64xf32>
    %cst_73 = arith.constant 0.000000e+00 : f32
    %212 = vector.broadcast %cst_73 : f32 to vector<16x64xf32>
    %213 = arith.maximumf %211, %212 : vector<16x64xf32>
    %c0_74 = arith.constant 0 : index
    %c0_75 = arith.constant 0 : index
    %214 = vector.load %arg9[%c0_74, %c0_75] : memref<64x32xf32, #tpu.memory_space<vmem>>, vector<64x32xf32>
    %cst_76 = arith.constant dense<0.000000e+00> : vector<16x32xf32>
    %215 = tpu.matmul %213, %214, %cst_76 {dimension_numbers = #tpu.dot_dimension_numbers<[1], [0], [0], [1], [0, 0, 1, 1], [], []>} : vector<16x64xf32>, vector<64x32xf32>, vector<16x32xf32> -> vector<16x32xf32>
    %c0_77 = arith.constant 0 : index
    %c0_78 = arith.constant 0 : index
    %216 = vector.load %arg10[%c0_77, %c0_78] : memref<1x32xf32, #tpu.memory_space<vmem>>, vector<1x32xf32>
    %217 = vector.broadcast %216 : vector<1x32xf32> to vector<16x32xf32>
    %218 = arith.addf %215, %217 : vector<16x32xf32>
    %219 = arith.addf %206, %218 : vector<16x32xf32>
    %cst_79 = arith.constant dense<0.000000e+00> : vector<16xf32>
    %220 = vector.multi_reduction <add>, %219, %cst_79 [1] : vector<16x32xf32> to vector<16xf32>
    %221 = vector.shape_cast %220 : vector<16xf32> to vector<16x1xf32>
    %cst_80 = arith.constant 3.200000e+01 : f32
    %222 = vector.broadcast %cst_80 : f32 to vector<16x1xf32>
    %223 = arith.divf %221, %222 : vector<16x1xf32>
    %224 = arith.mulf %219, %219 : vector<16x32xf32>
    %cst_81 = arith.constant dense<0.000000e+00> : vector<16xf32>
    %225 = vector.multi_reduction <add>, %224, %cst_81 [1] : vector<16x32xf32> to vector<16xf32>
    %226 = vector.shape_cast %225 : vector<16xf32> to vector<16x1xf32>
    %cst_82 = arith.constant 3.200000e+01 : f32
    %227 = vector.broadcast %cst_82 : f32 to vector<16x1xf32>
    %228 = arith.divf %226, %227 : vector<16x1xf32>
    %229 = arith.mulf %223, %223 : vector<16x1xf32>
    %230 = arith.subf %228, %229 : vector<16x1xf32>
    %231 = vector.broadcast %223 : vector<16x1xf32> to vector<16x32xf32>
    %232 = arith.subf %219, %231 : vector<16x32xf32>
    %cst_83 = arith.constant 9.99999974E-6 : f32
    %233 = vector.broadcast %cst_83 : f32 to vector<16x1xf32>
    %234 = arith.addf %230, %233 : vector<16x1xf32>
    %235 = math.rsqrt %234 : vector<16x1xf32>
    %236 = vector.broadcast %235 : vector<16x1xf32> to vector<16x32xf32>
    %237 = arith.mulf %232, %236 : vector<16x32xf32>
    %c0_84 = arith.constant 0 : index
    %c0_85 = arith.constant 0 : index
    %238 = vector.load %arg11[%c0_84, %c0_85] : memref<1x32xf32, #tpu.memory_space<vmem>>, vector<1x32xf32>
    %239 = vector.broadcast %238 : vector<1x32xf32> to vector<16x32xf32>
    %240 = arith.mulf %237, %239 : vector<16x32xf32>
    %c0_86 = arith.constant 0 : index
    %c0_87 = arith.constant 0 : index
    %241 = vector.load %arg12[%c0_86, %c0_87] : memref<1x32xf32, #tpu.memory_space<vmem>>, vector<1x32xf32>
    %242 = vector.broadcast %241 : vector<1x32xf32> to vector<16x32xf32>
    %243 = arith.addf %240, %242 : vector<16x32xf32>
    %c0_88 = arith.constant 0 : index
    %c0_89 = arith.constant 0 : index
    %244 = vector.load %arg13[%c0_88, %c0_89] : memref<16x32xf32, #tpu.memory_space<vmem>>, vector<16x32xf32>
    tpu.vector_store %arg13[%c0_88, %c0_89], %243 {strides = array<i32>} : memref<16x32xf32, #tpu.memory_space<vmem>>, vector<16x32xf32>,
    return
  }
}

</mosaic_0001>

<llo_original>
// kernel: tpu_custom_call.1
$region0: #{tpu_custom_call.1}
  #allocation0 [shape = 'u32[]', space=smem, size = 0x4, offset = 0x4, fixed_abs, tag = 'smem constant byte address 0x4 - core index']
  #allocation1 [shape = 'u32[72,128]{1,0:T(1,128)}', space=vmem, size = 0x9000, scoped, tag = 'internal scratch']
  %s0 = inlined_call_operand.hbm [shape: f32[16,32], index: 0, kind: input, shape index: {}]
  %s1 = inlined_call_operand.vmem [shape: f32[32,96], index: 1, kind: input, shape index: {}]
  %s2 = inlined_call_operand.vmem [shape: f32[1,96], index: 2, kind: input, shape index: {}]
  %s3 = inlined_call_operand.vmem [shape: f32[32,32], index: 3, kind: input, shape index: {}]
  %s4 = inlined_call_operand.vmem [shape: f32[1,32], index: 4, kind: input, shape index: {}]
  %s5 = inlined_call_operand.vmem [shape: f32[1,32], index: 5, kind: input, shape index: {}]
  %s6 = inlined_call_operand.vmem [shape: f32[1,32], index: 6, kind: input, shape index: {}]
  %s7 = inlined_call_operand.vmem [shape: f32[32,64], index: 7, kind: input, shape index: {}]
  %s8 = inlined_call_operand.vmem [shape: f32[1,64], index: 8, kind: input, shape index: {}]
  %s9 = inlined_call_operand.vmem [shape: f32[64,32], index: 9, kind: input, shape index: {}]
  %s10 = inlined_call_operand.vmem [shape: f32[1,32], index: 10, kind: input, shape index: {}]
  %s11 = inlined_call_operand.vmem [shape: f32[1,32], index: 11, kind: input, shape index: {}]
  %s12 = inlined_call_operand.vmem [shape: f32[1,32], index: 12, kind: input, shape index: {}]
  %s13 = inlined_call_operand.hbm [shape: f32[16,32], index: 13, kind: output, shape index: {}]
  %s14 = sld [smem:[#allocation0]]
  $region66: #{tpu_custom_call.1} parent=0
    _
  %s16 = ssub.s32 1, %s14
  %s17 = scalar_select 0, %s16, %s14
  $region1: #{tpu_custom_call.1} parent=0
    #allocation2 [shape = 'u8[8192]{0}', space=vmem, size = 0x2000, scoped, tag = 'input window, operand 0, single buffered']
    #allocation3 [shape = 's32[1]{0}', space=sflag, size = 0x4, scoped, tag = 'scoped memory for tpu_custom_call.1']
    #allocation4 [shape = 's32[1]{0}', space=sflag, size = 0x4, scoped, tag = 'scoped memory for tpu_custom_call.1']
    #allocation5 [shape = 'u8[8192]{0}', space=vmem, size = 0x2000, scoped, tag = 'output window, operand 0, single buffered']
    %18 = vsyncpa [#allocation3], 0
    %19 = vsyncpa [#allocation4], 0
    // Predicated region
    $region2: #{tpu_custom_call.1} parent=1 // pred_check
      _
    $region3: #{tpu_custom_call.1} parent=1 // pred_check_branch
      %21 = sbr.rel (0) target = $region5
    $region4: #{tpu_custom_call.1} parent=1 // pred_region
      %23 = vsyncadd [#allocation3], 0
      %s24 = sshll.u32 %s0, 4
      %s25 = int_to_ptr.hbm [resolvable:$true] %s24
      %s26 = sshll.u32 [#allocation2], 4
      %s27 = int_to_ptr.vmem [resolvable:$true] %s26
      %32 = dma.hbm_to_vmem [thread:$0]  %s25, 256, %s27, [#allocation3], 128, 128, 8
    $region5: #{tpu_custom_call.1} parent=1 // pred_fallthru
      _
    // Predicated region
    $region6: #{tpu_custom_call.1} parent=1 // pred_check
      _
    $region7: #{tpu_custom_call.1} parent=1 // pred_check_branch
      %34 = sbr.rel (0) target = $region9
    $region8: #{tpu_custom_call.1} parent=1 // pred_region
      _
    $region9: #{tpu_custom_call.1} parent=1 // pred_fallthru
      _
    // Predicated region
    $region10: #{tpu_custom_call.1} parent=1 // pred_check
      _
    $region11: #{tpu_custom_call.1} parent=1 // pred_check_branch
      %36 = sbr.rel (0) target = $region13
    $region12: #{tpu_custom_call.1} parent=1 // pred_region
      _
    $region13: #{tpu_custom_call.1} parent=1 // pred_fallthru
      _
    // Predicated region
    $region14: #{tpu_custom_call.1} parent=1 // pred_check
      _
    $region15: #{tpu_custom_call.1} parent=1 // pred_check_branch
      %38 = sbr.rel (0) target = $region17
    $region16: #{tpu_custom_call.1} parent=1 // pred_region
      _
    $region17: #{tpu_custom_call.1} parent=1 // pred_fallthru
      _
    // Predicated region
    $region18: #{tpu_custom_call.1} parent=1 // pred_check
      _
    $region19: #{tpu_custom_call.1} parent=1 // pred_check_branch
      %40 = sbr.rel (0) target = $region21
    $region20: #{tpu_custom_call.1} parent=1 // pred_region
      _
    $region21: #{tpu_custom_call.1} parent=1 // pred_fallthru
      _
    // Predicated region
    $region22: #{tpu_custom_call.1} parent=1 // pred_check
      _
    $region23: #{tpu_custom_call.1} parent=1 // pred_check_branch
      %42 = sbr.rel (0) target = $region25
    $region24: #{tpu_custom_call.1} parent=1 // pred_region
      _
    $region25: #{tpu_custom_call.1} parent=1 // pred_fallthru
      _
    // Predicated region
    $region26: #{tpu_custom_call.1} parent=1 // pred_check
      _
    $region27: #{tpu_custom_call.1} parent=1 // pred_check_branch
      %44 = sbr.rel (0) target = $region29
    $region28: #{tpu_custom_call.1} parent=1 // pred_region
      _
    $region29: #{tpu_custom_call.1} parent=1 // pred_fallthru
      _
    // Predicated region
    $region30: #{tpu_custom_call.1} parent=1 // pred_check
      _
    $region31: #{tpu_custom_call.1} parent=1 // pred_check_branch
      %46 = sbr.rel (0) target = $region33
    $region32: #{tpu_custom_call.1} parent=1 // pred_region
      _
    $region33: #{tpu_custom_call.1} parent=1 // pred_fallthru
      _
    // Predicated region
    $region34: #{tpu_custom_call.1} parent=1 // pred_check
      _
    $region35: #{tpu_custom_call.1} parent=1 // pred_check_branch
      %48 = sbr.rel (0) target = $region37
    $region36: #{tpu_custom_call.1} parent=1 // pred_region
      _
    $region37: #{tpu_custom_call.1} parent=1 // pred_fallthru
      _
    // Predicated region
    $region38: #{tpu_custom_call.1} parent=1 // pred_check
      _
    $region39: #{tpu_custom_call.1} parent=1 // pred_check_branch
      %50 = sbr.rel (0) target = $region41
    $region40: #{tpu_custom_call.1} parent=1 // pred_region
      _
    $region41: #{tpu_custom_call.1} parent=1 // pred_fallthru
      _
    // Predicated region
    $region42: #{tpu_custom_call.1} parent=1 // pred_check
      _
    $region43: #{tpu_custom_call.1} parent=1 // pred_check_branch
      %52 = sbr.rel (0) target = $region45
    $region44: #{tpu_custom_call.1} parent=1 // pred_region
      _
    $region45: #{tpu_custom_call.1} parent=1 // pred_fallthru
      _
    // Predicated region
    $region46: #{tpu_custom_call.1} parent=1 // pred_check
      _
    $region47: #{tpu_custom_call.1} parent=1 // pred_check_branch
      %54 = sbr.rel (0) target = $region49
    $region48: #{tpu_custom_call.1} parent=1 // pred_region
      _
    $region49: #{tpu_custom_call.1} parent=1 // pred_fallthru
      _
    // Predicated region
    $region50: #{tpu_custom_call.1} parent=1 // pred_check
      _
    $region51: #{tpu_custom_call.1} parent=1 // pred_check_branch
      %56 = sbr.rel (0) target = $region53
    $region52: #{tpu_custom_call.1} parent=1 // pred_region
      _
    $region53: #{tpu_custom_call.1} parent=1 // pred_fallthru
      _
    // Predicated region
    $region54: #{tpu_custom_call.1} parent=1 // pred_check
      _
    $region55: #{tpu_custom_call.1} parent=1 // pred_check_branch
      %58 = sbr.rel (0) target = $region57
    $region56: #{tpu_custom_call.1} parent=1 // pred_region
      %60 = dma.done [#allocation3], 256
    $region57: #{tpu_custom_call.1} parent=1 // pred_fallthru
      _
    %v61 = vld [vmem:[#allocation2] sm:$0xff]
    %v62 = vld [vmem:[#allocation2 + $0x8] sm:$0xff]
    %v63 = vld [vmem:[%s1] sm:$0xff]
    %v64 = vld [vmem:[%s1 + $0x8] sm:$0xff]
    %v65 = vld [vmem:[%s1 + $0x10] sm:$0xff]
    %v66 = vld [vmem:[%s1 + $0x18] sm:$0xff]
    %v67 = vld [vmem:[%s2] sm:$0x1]
    %v69 = vperm.slane %v67, 0
    %vm71 = vcmask 261120
    %v73 = vsel %vm71, %v61, 0
    %v76 = vsel %vm71, %v62, 0
    %78 = vmatpush.msra.mxu0 0.0
    %79 = vmatpush.msra.mxu0 0.0
    %80 = vmatpush.msra.mxu0 0.0
    %81 = vmatpush.msra.mxu0 0.0
    %82 = vmatpush.msra.mxu0 0.0
    %83 = vmatpush.msra.mxu0 0.0
    %84 = vmatpush.msra.mxu0 0.0
    %85 = vmatpush.msra.mxu0 0.0
    %86 = vmatpush.msra.mxu0 0.0
    %87 = vmatpush.msra.mxu0 0.0
    %88 = vmatpush.msra.mxu0 0.0
    %89 = vmatpush.msra.mxu0 0.0
    %90 = vmatpush.msra.mxu0 %v66
    %91 = vmatpush.msra.mxu0 %v65
    %92 = vmatpush.msra.mxu0 %v64
    %93 = vmatpush.msra.mxu0 %v63
    %94 = vmatmul.f32.gmra.mxu0 %v73
    %v95 = vpop.f32.mrf.mxu0
    %v96 = vadd.f32 %v69, %v95
    %97 = vmatmul.f32.gmra.mxu0 %v76
    %v98 = vpop.f32.mrf.mxu0
    %v99 = vadd.f32 %v69, %v98
    %100 = vdwg.mxu0
    %v101 = vld [vmem:[%s3] sm:$0xff]
    %v102 = vld [vmem:[%s3 + $0x8] sm:$0xff]
    %v103 = vld [vmem:[%s3 + $0x10] sm:$0xff]
    %v104 = vld [vmem:[%s3 + $0x18] sm:$0xff]
    %106 = vrot.lane.b32.xlu0 %v96, 96
    %v107 = vpop.permute.xlu0 %106
    %vm108 = vcmask 64512
    %v109 = vsel %vm108, %v96, 0
    %v111 = vsel %vm108, %v107, 0
    %113 = vmatpush.xpose.msra.mxu0 0.0
    %114 = vmatpush.xpose.msra.mxu0 0.0
    %115 = vmatpush.xpose.msra.mxu0 0.0
    %116 = vmatpush.xpose.msra.mxu0 0.0
    %117 = vmatpush.xpose.msra.mxu0 0.0
    %118 = vmatpush.xpose.msra.mxu0 0.0
    %119 = vmatpush.xpose.msra.mxu0 0.0
    %120 = vmatpush.xpose.msra.mxu0 0.0
    %121 = vmatpush.xpose.msra.mxu0 0.0
    %122 = vmatpush.xpose.msra.mxu0 0.0
    %123 = vmatpush.xpose.msra.mxu0 0.0
    %124 = vmatpush.xpose.msra.mxu0 0.0
    %125 = vmatpush.xpose.msra.mxu0 0.0
    %126 = vmatpush.xpose.msra.mxu0 0.0
    %127 = vmatpush.xpose.msra.mxu0 0.0
    %128 = vmatpush.xpose.msra.mxu0 %v111
    %129 = vmatmul.f32.gmra.mxu0 %v109
    %v130 = vpop.f32.mrf.mxu0
    %v131 = vadd.f32 0.0, %v130
    %132 = vdwg.mxu0
    %v133 = vmul.f32 %v131, 0.35355338
    %v134 = vsel %vm108, %v133, -inf
    %135 = vmax.xlane.f32.xlu0 %v134
    %v136 = vpop.xlane.xlu0 %135
    %v137 = vsub.f32 %v133, %v136
    %v138 = vmul.f32 %v137, 1.442695
    %v139 = vpow.pop %v138
    %v140 = vsel %vm108, %v139, 0.0
    %141 = vadd.xlane.f32.xlu0 %v140
    %v142 = vpop.xlane.xlu0 %141
    %v143 = vrcp.pop %v142
    %v144 = vmul.f32 %v139, %v143
    %145 = vrot.lane.b32.xlu0 %v96, 64
    %v146 = vpop.permute.xlu0 %145
    %v149 = vsel %vm108, %v144, 0
    %151 = vmatpush.msra.mxu0 0.0
    %152 = vmatpush.msra.mxu0 0.0
    %153 = vmatpush.msra.mxu0 0.0
    %154 = vmatpush.msra.mxu0 0.0
    %155 = vmatpush.msra.mxu0 0.0
    %156 = vmatpush.msra.mxu0 0.0
    %157 = vmatpush.msra.mxu0 0.0
    %158 = vmatpush.msra.mxu0 0.0
    %159 = vmatpush.msra.mxu0 0.0
    %160 = vmatpush.msra.mxu0 0.0
    %161 = vmatpush.msra.mxu0 0.0
    %162 = vmatpush.msra.mxu0 0.0
    %163 = vmatpush.msra.mxu0 0.0
    %164 = vmatpush.msra.mxu0 0.0
    %165 = vmatpush.msra.mxu0 0.0
    %166 = vmatpush.msra.mxu0 %v146
    %167 = vmatmul.f32.gmra.mxu0 %v149
    %v168 = vpop.f32.mrf.mxu0
    %v169 = vadd.f32 0.0, %v168
    %170 = vdwg.mxu0
    %171 = vrot.lane.b32.xlu0 %v96, 120
    %v172 = vpop.permute.xlu0 %171
    %173 = vrot.lane.b32.xlu0 %v96, 88
    %v174 = vpop.permute.xlu0 %173
    %v175 = vsel %vm108, %v172, 0
    %v177 = vsel %vm108, %v174, 0
    %179 = vmatpush.xpose.msra.mxu0 0.0
    %180 = vmatpush.xpose.msra.mxu0 0.0
    %181 = vmatpush.xpose.msra.mxu0 0.0
    %182 = vmatpush.xpose.msra.mxu0 0.0
    %183 = vmatpush.xpose.msra.mxu0 0.0
    %184 = vmatpush.xpose.msra.mxu0 0.0
    %185 = vmatpush.xpose.msra.mxu0 0.0
    %186 = vmatpush.xpose.msra.mxu0 0.0
    %187 = vmatpush.xpose.msra.mxu0 0.0
    %188 = vmatpush.xpose.msra.mxu0 0.0
    %189 = vmatpush.xpose.msra.mxu0 0.0
    %190 = vmatpush.xpose.msra.mxu0 0.0
    %191 = vmatpush.xpose.msra.mxu0 0.0
    %192 = vmatpush.xpose.msra.mxu0 0.0
    %193 = vmatpush.xpose.msra.mxu0 0.0
    %194 = vmatpush.xpose.msra.mxu0 %v177
    %195 = vmatmul.f32.gmra.mxu0 %v175
    %v196 = vpop.f32.mrf.mxu0
    %v197 = vadd.f32 0.0, %v196
    %198 = vdwg.mxu0
    %v199 = vmul.f32 %v197, 0.35355338
    %v200 = vsel %vm108, %v199, -inf
    %201 = vmax.xlane.f32.xlu0 %v200
    %v202 = vpop.xlane.xlu0 %201
    %v203 = vsub.f32 %v199, %v202
    %v204 = vmul.f32 %v203, 1.442695
    %v205 = vpow.pop %v204
    %v206 = vsel %vm108, %v205, 0.0
    %207 = vadd.xlane.f32.xlu0 %v206
    %v208 = vpop.xlane.xlu0 %207
    %v209 = vrcp.pop %v208
    %v210 = vmul.f32 %v205, %v209
    %211 = vrot.lane.b32.xlu0 %v96, 56
    %v212 = vpop.permute.xlu0 %211
    %v215 = vsel %vm108, %v210, 0
    %217 = vmatpush.msra.mxu0 0.0
    %218 = vmatpush.msra.mxu0 0.0
    %219 = vmatpush.msra.mxu0 0.0
    %220 = vmatpush.msra.mxu0 0.0
    %221 = vmatpush.msra.mxu0 0.0
    %222 = vmatpush.msra.mxu0 0.0
    %223 = vmatpush.msra.mxu0 0.0
    %224 = vmatpush.msra.mxu0 0.0
    %225 = vmatpush.msra.mxu0 0.0
    %226 = vmatpush.msra.mxu0 0.0
    %227 = vmatpush.msra.mxu0 0.0
    %228 = vmatpush.msra.mxu0 0.0
    %229 = vmatpush.msra.mxu0 0.0
    %230 = vmatpush.msra.mxu0 0.0
    %231 = vmatpush.msra.mxu0 0.0
    %232 = vmatpush.msra.mxu0 %v212
    %233 = vmatmul.f32.gmra.mxu0 %v215
    %v234 = vpop.f32.mrf.mxu0
    %v235 = vadd.f32 0.0, %v234
    %236 = vdwg.mxu0
    %v238 = vsel %vm108, %v235, 0
    %240 = vmatpush.msra.mxu0 0.0
    %241 = vmatpush.msra.mxu0 0.0
    %242 = vmatpush.msra.mxu0 0.0
    %243 = vmatpush.msra.mxu0 0.0
    %244 = vmatpush.msra.mxu0 0.0
    %245 = vmatpush.msra.mxu0 0.0
    %246 = vmatpush.msra.mxu0 0.0
    %247 = vmatpush.msra.mxu0 0.0
    %248 = vmatpush.msra.mxu0 0.0
    %249 = vmatpush.msra.mxu0 0.0
    %250 = vmatpush.msra.mxu0 0.0
    %251 = vmatpush.msra.mxu0 0.0
    %252 = vmatpush.msra.mxu0 0.0
    %253 = vmatpush.msra.mxu0 0.0
    %254 = vmatpush.msra.mxu0 0.0
    %255 = vmatpush.msra.mxu0 %v102
    %256 = vmatmul.f32.gmra.mxu0 %v238
    %v257 = vpop.f32.mrf.mxu0
    %v258 = vadd.f32 0.0, %v257
    %259 = vdwg.mxu0
    %v261 = vsel %vm108, %v169, 0
    %263 = vmatpush.msra.mxu0 0.0
    %264 = vmatpush.msra.mxu0 0.0
    %265 = vmatpush.msra.mxu0 0.0
    %266 = vmatpush.msra.mxu0 0.0
    %267 = vmatpush.msra.mxu0 0.0
    %268 = vmatpush.msra.mxu0 0.0
    %269 = vmatpush.msra.mxu0 0.0
    %270 = vmatpush.msra.mxu0 0.0
    %271 = vmatpush.msra.mxu0 0.0
    %272 = vmatpush.msra.mxu0 0.0
    %273 = vmatpush.msra.mxu0 0.0
    %274 = vmatpush.msra.mxu0 0.0
    %275 = vmatpush.msra.mxu0 0.0
    %276 = vmatpush.msra.mxu0 0.0
    %277 = vmatpush.msra.mxu0 0.0
    %278 = vmatpush.msra.mxu0 %v101
    %279 = vmatmul.f32.gmra.mxu0 %v261
    %v280 = vpop.f32.mrf.mxu0
    %v281 = vadd.f32 %v258, %v280
    %282 = vdwg.mxu0
    %283 = vrot.lane.b32.xlu0 %v96, 112
    %v284 = vpop.permute.xlu0 %283
    %285 = vrot.lane.b32.xlu0 %v96, 80
    %v286 = vpop.permute.xlu0 %285
    %v287 = vsel %vm108, %v284, 0
    %v289 = vsel %vm108, %v286, 0
    %291 = vmatpush.xpose.msra.mxu0 0.0
    %292 = vmatpush.xpose.msra.mxu0 0.0
    %293 = vmatpush.xpose.msra.mxu0 0.0
    %294 = vmatpush.xpose.msra.mxu0 0.0
    %295 = vmatpush.xpose.msra.mxu0 0.0
    %296 = vmatpush.xpose.msra.mxu0 0.0
    %297 = vmatpush.xpose.msra.mxu0 0.0
    %298 = vmatpush.xpose.msra.mxu0 0.0
    %299 = vmatpush.xpose.msra.mxu0 0.0
    %300 = vmatpush.xpose.msra.mxu0 0.0
    %301 = vmatpush.xpose.msra.mxu0 0.0
    %302 = vmatpush.xpose.msra.mxu0 0.0
    %303 = vmatpush.xpose.msra.mxu0 0.0
    %304 = vmatpush.xpose.msra.mxu0 0.0
    %305 = vmatpush.xpose.msra.mxu0 0.0
    %306 = vmatpush.xpose.msra.mxu0 %v289
    %307 = vmatmul.f32.gmra.mxu0 %v287
    %v308 = vpop.f32.mrf.mxu0
    %v309 = vadd.f32 0.0, %v308
    %310 = vdwg.mxu0
    %v311 = vmul.f32 %v309, 0.35355338
    %v312 = vsel %vm108, %v311, -inf
    %313 = vmax.xlane.f32.xlu0 %v312
    %v314 = vpop.xlane.xlu0 %313
    %v315 = vsub.f32 %v311, %v314
    %v316 = vmul.f32 %v315, 1.442695
    %v317 = vpow.pop %v316
    %v318 = vsel %vm108, %v317, 0.0
    %319 = vadd.xlane.f32.xlu0 %v318
    %v320 = vpop.xlane.xlu0 %319
    %v321 = vrcp.pop %v320
    %v322 = vmul.f32 %v317, %v321
    %323 = vrot.lane.b32.xlu0 %v96, 48
    %v324 = vpop.permute.xlu0 %323
    %v327 = vsel %vm108, %v322, 0
    %329 = vmatpush.msra.mxu0 0.0
    %330 = vmatpush.msra.mxu0 0.0
    %331 = vmatpush.msra.mxu0 0.0
    %332 = vmatpush.msra.mxu0 0.0
    %333 = vmatpush.msra.mxu0 0.0
    %334 = vmatpush.msra.mxu0 0.0
    %335 = vmatpush.msra.mxu0 0.0
    %336 = vmatpush.msra.mxu0 0.0
    %337 = vmatpush.msra.mxu0 0.0
    %338 = vmatpush.msra.mxu0 0.0
    %339 = vmatpush.msra.mxu0 0.0
    %340 = vmatpush.msra.mxu0 0.0
    %341 = vmatpush.msra.mxu0 0.0
    %342 = vmatpush.msra.mxu0 0.0
    %343 = vmatpush.msra.mxu0 0.0
    %344 = vmatpush.msra.mxu0 %v324
    %345 = vmatmul.f32.gmra.mxu0 %v327
    %v346 = vpop.f32.mrf.mxu0
    %v347 = vadd.f32 0.0, %v346
    %348 = vdwg.mxu0
    %v350 = vsel %vm108, %v347, 0
    %352 = vmatpush.msra.mxu0 0.0
    %353 = vmatpush.msra.mxu0 0.0
    %354 = vmatpush.msra.mxu0 0.0
    %355 = vmatpush.msra.mxu0 0.0
    %356 = vmatpush.msra.mxu0 0.0
    %357 = vmatpush.msra.mxu0 0.0
    %358 = vmatpush.msra.mxu0 0.0
    %359 = vmatpush.msra.mxu0 0.0
    %360 = vmatpush.msra.mxu0 0.0
    %361 = vmatpush.msra.mxu0 0.0
    %362 = vmatpush.msra.mxu0 0.0
    %363 = vmatpush.msra.mxu0 0.0
    %364 = vmatpush.msra.mxu0 0.0
    %365 = vmatpush.msra.mxu0 0.0
    %366 = vmatpush.msra.mxu0 0.0
    %367 = vmatpush.msra.mxu0 %v103
    %368 = vmatmul.f32.gmra.mxu0 %v350
    %v369 = vpop.f32.mrf.mxu0
    %v370 = vadd.f32 0.0, %v369
    %371 = vdwg.mxu0
    %v372 = vadd.f32 %v281, %v370
    %373 = vrot.lane.b32.xlu0 %v96, 104
    %v374 = vpop.permute.xlu0 %373
    %375 = vrot.lane.b32.xlu0 %v96, 72
    %v376 = vpop.permute.xlu0 %375
    %v377 = vsel %vm108, %v374, 0
    %v379 = vsel %vm108, %v376, 0
    %381 = vmatpush.xpose.msra.mxu0 0.0
    %382 = vmatpush.xpose.msra.mxu0 0.0
    %383 = vmatpush.xpose.msra.mxu0 0.0
    %384 = vmatpush.xpose.msra.mxu0 0.0
    %385 = vmatpush.xpose.msra.mxu0 0.0
    %386 = vmatpush.xpose.msra.mxu0 0.0
    %387 = vmatpush.xpose.msra.mxu0 0.0
    %388 = vmatpush.xpose.msra.mxu0 0.0
    %389 = vmatpush.xpose.msra.mxu0 0.0
    %390 = vmatpush.xpose.msra.mxu0 0.0
    %391 = vmatpush.xpose.msra.mxu0 0.0
    %392 = vmatpush.xpose.msra.mxu0 0.0
    %393 = vmatpush.xpose.msra.mxu0 0.0
    %394 = vmatpush.xpose.msra.mxu0 0.0
    %395 = vmatpush.xpose.msra.mxu0 0.0
    %396 = vmatpush.xpose.msra.mxu0 %v379
    %397 = vmatmul.f32.gmra.mxu0 %v377
    %v398 = vpop.f32.mrf.mxu0
    %v399 = vadd.f32 0.0, %v398
    %400 = vdwg.mxu0
    %v401 = vmul.f32 %v399, 0.35355338
    %v402 = vsel %vm108, %v401, -inf
    %403 = vmax.xlane.f32.xlu0 %v402
    %v404 = vpop.xlane.xlu0 %403
    %v405 = vsub.f32 %v401, %v404
    %v406 = vmul.f32 %v405, 1.442695
    %v407 = vpow.pop %v406
    %v408 = vsel %vm108, %v407, 0.0
    %409 = vadd.xlane.f32.xlu0 %v408
    %v410 = vpop.xlane.xlu0 %409
    %v411 = vrcp.pop %v410
    %v412 = vmul.f32 %v407, %v411
    %413 = vrot.lane.b32.xlu0 %v96, 40
    %v414 = vpop.permute.xlu0 %413
    %v417 = vsel %vm108, %v412, 0
    %419 = vmatpush.msra.mxu0 0.0
    %420 = vmatpush.msra.mxu0 0.0
    %421 = vmatpush.msra.mxu0 0.0
    %422 = vmatpush.msra.mxu0 0.0
    %423 = vmatpush.msra.mxu0 0.0
    %424 = vmatpush.msra.mxu0 0.0
    %425 = vmatpush.msra.mxu0 0.0
    %426 = vmatpush.msra.mxu0 0.0
    %427 = vmatpush.msra.mxu0 0.0
    %428 = vmatpush.msra.mxu0 0.0
    %429 = vmatpush.msra.mxu0 0.0
    %430 = vmatpush.msra.mxu0 0.0
    %431 = vmatpush.msra.mxu0 0.0
    %432 = vmatpush.msra.mxu0 0.0
    %433 = vmatpush.msra.mxu0 0.0
    %434 = vmatpush.msra.mxu0 %v414
    %435 = vmatmul.f32.gmra.mxu0 %v417
    %v436 = vpop.f32.mrf.mxu0
    %v437 = vadd.f32 0.0, %v436
    %438 = vdwg.mxu0
    %v440 = vsel %vm108, %v437, 0
    %442 = vmatpush.msra.mxu0 0.0
    %443 = vmatpush.msra.mxu0 0.0
    %444 = vmatpush.msra.mxu0 0.0
    %445 = vmatpush.msra.mxu0 0.0
    %446 = vmatpush.msra.mxu0 0.0
    %447 = vmatpush.msra.mxu0 0.0
    %448 = vmatpush.msra.mxu0 0.0
    %449 = vmatpush.msra.mxu0 0.0
    %450 = vmatpush.msra.mxu0 0.0
    %451 = vmatpush.msra.mxu0 0.0
    %452 = vmatpush.msra.mxu0 0.0
    %453 = vmatpush.msra.mxu0 0.0
    %454 = vmatpush.msra.mxu0 0.0
    %455 = vmatpush.msra.mxu0 0.0
    %456 = vmatpush.msra.mxu0 0.0
    %457 = vmatpush.msra.mxu0 %v104
    %458 = vmatmul.f32.gmra.mxu0 %v440
    %v459 = vpop.f32.mrf.mxu0
    %v460 = vadd.f32 0.0, %v459
    %461 = vdwg.mxu0
    %v462 = vadd.f32 %v372, %v460
    %464 = vrot.lane.b32.xlu0 %v99, 96
    %v465 = vpop.permute.xlu0 %464
    %v466 = vsel %vm108, %v99, 0
    %v468 = vsel %vm108, %v465, 0
    %470 = vmatpush.xpose.msra.mxu0 0.0
    %471 = vmatpush.xpose.msra.mxu0 0.0
    %472 = vmatpush.xpose.msra.mxu0 0.0
    %473 = vmatpush.xpose.msra.mxu0 0.0
    %474 = vmatpush.xpose.msra.mxu0 0.0
    %475 = vmatpush.xpose.msra.mxu0 0.0
    %476 = vmatpush.xpose.msra.mxu0 0.0
    %477 = vmatpush.xpose.msra.mxu0 0.0
    %478 = vmatpush.xpose.msra.mxu0 0.0
    %479 = vmatpush.xpose.msra.mxu0 0.0
    %480 = vmatpush.xpose.msra.mxu0 0.0
    %481 = vmatpush.xpose.msra.mxu0 0.0
    %482 = vmatpush.xpose.msra.mxu0 0.0
    %483 = vmatpush.xpose.msra.mxu0 0.0
    %484 = vmatpush.xpose.msra.mxu0 0.0
    %485 = vmatpush.xpose.msra.mxu0 %v468
    %486 = vmatmul.f32.gmra.mxu0 %v466
    %v487 = vpop.f32.mrf.mxu0
    %v488 = vadd.f32 0.0, %v487
    %489 = vdwg.mxu0
    %v490 = vmul.f32 %v488, 0.35355338
    %v491 = vsel %vm108, %v490, -inf
    %492 = vmax.xlane.f32.xlu0 %v491
    %v493 = vpop.xlane.xlu0 %492
    %v494 = vsub.f32 %v490, %v493
    %v495 = vmul.f32 %v494, 1.442695
    %v496 = vpow.pop %v495
    %v497 = vsel %vm108, %v496, 0.0
    %498 = vadd.xlane.f32.xlu0 %v497
    %v499 = vpop.xlane.xlu0 %498
    %v500 = vrcp.pop %v499
    %v501 = vmul.f32 %v496, %v500
    %502 = vrot.lane.b32.xlu0 %v99, 64
    %v503 = vpop.permute.xlu0 %502
    %v506 = vsel %vm108, %v501, 0
    %508 = vmatpush.msra.mxu0 0.0
    %509 = vmatpush.msra.mxu0 0.0
    %510 = vmatpush.msra.mxu0 0.0
    %511 = vmatpush.msra.mxu0 0.0
    %512 = vmatpush.msra.mxu0 0.0
    %513 = vmatpush.msra.mxu0 0.0
    %514 = vmatpush.msra.mxu0 0.0
    %515 = vmatpush.msra.mxu0 0.0
    %516 = vmatpush.msra.mxu0 0.0
    %517 = vmatpush.msra.mxu0 0.0
    %518 = vmatpush.msra.mxu0 0.0
    %519 = vmatpush.msra.mxu0 0.0
    %520 = vmatpush.msra.mxu0 0.0
    %521 = vmatpush.msra.mxu0 0.0
    %522 = vmatpush.msra.mxu0 0.0
    %523 = vmatpush.msra.mxu0 %v503
    %524 = vmatmul.f32.gmra.mxu0 %v506
    %v525 = vpop.f32.mrf.mxu0
    %v526 = vadd.f32 0.0, %v525
    %527 = vdwg.mxu0
    %528 = vrot.lane.b32.xlu0 %v99, 120
    %v529 = vpop.permute.xlu0 %528
    %530 = vrot.lane.b32.xlu0 %v99, 88
    %v531 = vpop.permute.xlu0 %530
    %v532 = vsel %vm108, %v529, 0
    %v534 = vsel %vm108, %v531, 0
    %536 = vmatpush.xpose.msra.mxu0 0.0
    %537 = vmatpush.xpose.msra.mxu0 0.0
    %538 = vmatpush.xpose.msra.mxu0 0.0
    %539 = vmatpush.xpose.msra.mxu0 0.0
    %540 = vmatpush.xpose.msra.mxu0 0.0
    %541 = vmatpush.xpose.msra.mxu0 0.0
    %542 = vmatpush.xpose.msra.mxu0 0.0
    %543 = vmatpush.xpose.msra.mxu0 0.0
    %544 = vmatpush.xpose.msra.mxu0 0.0
    %545 = vmatpush.xpose.msra.mxu0 0.0
    %546 = vmatpush.xpose.msra.mxu0 0.0
    %547 = vmatpush.xpose.msra.mxu0 0.0
    %548 = vmatpush.xpose.msra.mxu0 0.0
    %549 = vmatpush.xpose.msra.mxu0 0.0
    %550 = vmatpush.xpose.msra.mxu0 0.0
    %551 = vmatpush.xpose.msra.mxu0 %v534
    %552 = vmatmul.f32.gmra.mxu0 %v532
    %v553 = vpop.f32.mrf.mxu0
    %v554 = vadd.f32 0.0, %v553
    %555 = vdwg.mxu0
    %v556 = vmul.f32 %v554, 0.35355338
    %v557 = vsel %vm108, %v556, -inf
    %558 = vmax.xlane.f32.xlu0 %v557
    %v559 = vpop.xlane.xlu0 %558
    %v560 = vsub.f32 %v556, %v559
    %v561 = vmul.f32 %v560, 1.442695
    %v562 = vpow.pop %v561
    %v563 = vsel %vm108, %v562, 0.0
    %564 = vadd.xlane.f32.xlu0 %v563
    %v565 = vpop.xlane.xlu0 %564
    %v566 = vrcp.pop %v565
    %v567 = vmul.f32 %v562, %v566
    %568 = vrot.lane.b32.xlu0 %v99, 56
    %v569 = vpop.permute.xlu0 %568
    %v572 = vsel %vm108, %v567, 0
    %574 = vmatpush.msra.mxu0 0.0
    %575 = vmatpush.msra.mxu0 0.0
    %576 = vmatpush.msra.mxu0 0.0
    %577 = vmatpush.msra.mxu0 0.0
    %578 = vmatpush.msra.mxu0 0.0
    %579 = vmatpush.msra.mxu0 0.0
    %580 = vmatpush.msra.mxu0 0.0
    %581 = vmatpush.msra.mxu0 0.0
    %582 = vmatpush.msra.mxu0 0.0
    %583 = vmatpush.msra.mxu0 0.0
    %584 = vmatpush.msra.mxu0 0.0
    %585 = vmatpush.msra.mxu0 0.0
    %586 = vmatpush.msra.mxu0 0.0
    %587 = vmatpush.msra.mxu0 0.0
    %588 = vmatpush.msra.mxu0 0.0
    %589 = vmatpush.msra.mxu0 %v569
    %590 = vmatmul.f32.gmra.mxu0 %v572
    %v591 = vpop.f32.mrf.mxu0
    %v592 = vadd.f32 0.0, %v591
    %593 = vdwg.mxu0
    %v595 = vsel %vm108, %v592, 0
    %597 = vmatpush.msra.mxu0 0.0
    %598 = vmatpush.msra.mxu0 0.0
    %599 = vmatpush.msra.mxu0 0.0
    %600 = vmatpush.msra.mxu0 0.0
    %601 = vmatpush.msra.mxu0 0.0
    %602 = vmatpush.msra.mxu0 0.0
    %603 = vmatpush.msra.mxu0 0.0
    %604 = vmatpush.msra.mxu0 0.0
    %605 = vmatpush.msra.mxu0 0.0
    %606 = vmatpush.msra.mxu0 0.0
    %607 = vmatpush.msra.mxu0 0.0
    %608 = vmatpush.msra.mxu0 0.0
    %609 = vmatpush.msra.mxu0 0.0
    %610 = vmatpush.msra.mxu0 0.0
    %611 = vmatpush.msra.mxu0 0.0
    %612 = vmatpush.msra.mxu0 %v102
    %613 = vmatmul.f32.gmra.mxu0 %v595
    %v614 = vpop.f32.mrf.mxu0
    %v615 = vadd.f32 0.0, %v614
    %616 = vdwg.mxu0
    %v618 = vsel %vm108, %v526, 0
    %620 = vmatpush.msra.mxu0 0.0
    %621 = vmatpush.msra.mxu0 0.0
    %622 = vmatpush.msra.mxu0 0.0
    %623 = vmatpush.msra.mxu0 0.0
    %624 = vmatpush.msra.mxu0 0.0
    %625 = vmatpush.msra.mxu0 0.0
    %626 = vmatpush.msra.mxu0 0.0
    %627 = vmatpush.msra.mxu0 0.0
    %628 = vmatpush.msra.mxu0 0.0
    %629 = vmatpush.msra.mxu0 0.0
    %630 = vmatpush.msra.mxu0 0.0
    %631 = vmatpush.msra.mxu0 0.0
    %632 = vmatpush.msra.mxu0 0.0
    %633 = vmatpush.msra.mxu0 0.0
    %634 = vmatpush.msra.mxu0 0.0
    %635 = vmatpush.msra.mxu0 %v101
    %636 = vmatmul.f32.gmra.mxu0 %v618
    %v637 = vpop.f32.mrf.mxu0
    %v638 = vadd.f32 %v615, %v637
    %639 = vdwg.mxu0
    %640 = vrot.lane.b32.xlu0 %v99, 112
    %v641 = vpop.permute.xlu0 %640
    %642 = vrot.lane.b32.xlu0 %v99, 80
    %v643 = vpop.permute.xlu0 %642
    %v644 = vsel %vm108, %v641, 0
    %v646 = vsel %vm108, %v643, 0
    %648 = vmatpush.xpose.msra.mxu0 0.0
    %649 = vmatpush.xpose.msra.mxu0 0.0
    %650 = vmatpush.xpose.msra.mxu0 0.0
    %651 = vmatpush.xpose.msra.mxu0 0.0
    %652 = vmatpush.xpose.msra.mxu0 0.0
    %653 = vmatpush.xpose.msra.mxu0 0.0
    %654 = vmatpush.xpose.msra.mxu0 0.0
    %655 = vmatpush.xpose.msra.mxu0 0.0
    %656 = vmatpush.xpose.msra.mxu0 0.0
    %657 = vmatpush.xpose.msra.mxu0 0.0
    %658 = vmatpush.xpose.msra.mxu0 0.0
    %659 = vmatpush.xpose.msra.mxu0 0.0
    %660 = vmatpush.xpose.msra.mxu0 0.0
    %661 = vmatpush.xpose.msra.mxu0 0.0
    %662 = vmatpush.xpose.msra.mxu0 0.0
    %663 = vmatpush.xpose.msra.mxu0 %v646
    %664 = vmatmul.f32.gmra.mxu0 %v644
    %v665 = vpop.f32.mrf.mxu0
    %v666 = vadd.f32 0.0, %v665
    %667 = vdwg.mxu0
    %v668 = vmul.f32 %v666, 0.35355338
    %v669 = vsel %vm108, %v668, -inf
    %670 = vmax.xlane.f32.xlu0 %v669
    %v671 = vpop.xlane.xlu0 %670
    %v672 = vsub.f32 %v668, %v671
    %v673 = vmul.f32 %v672, 1.442695
    %v674 = vpow.pop %v673
    %v675 = vsel %vm108, %v674, 0.0
    %676 = vadd.xlane.f32.xlu0 %v675
    %v677 = vpop.xlane.xlu0 %676
    %v678 = vrcp.pop %v677
    %v679 = vmul.f32 %v674, %v678
    %680 = vrot.lane.b32.xlu0 %v99, 48
    %v681 = vpop.permute.xlu0 %680
    %v684 = vsel %vm108, %v679, 0
    %686 = vmatpush.msra.mxu0 0.0
    %687 = vmatpush.msra.mxu0 0.0
    %688 = vmatpush.msra.mxu0 0.0
    %689 = vmatpush.msra.mxu0 0.0
    %690 = vmatpush.msra.mxu0 0.0
    %691 = vmatpush.msra.mxu0 0.0
    %692 = vmatpush.msra.mxu0 0.0
    %693 = vmatpush.msra.mxu0 0.0
    %694 = vmatpush.msra.mxu0 0.0
    %695 = vmatpush.msra.mxu0 0.0
    %696 = vmatpush.msra.mxu0 0.0
    %697 = vmatpush.msra.mxu0 0.0
    %698 = vmatpush.msra.mxu0 0.0
    %699 = vmatpush.msra.mxu0 0.0
    %700 = vmatpush.msra.mxu0 0.0
    %701 = vmatpush.msra.mxu0 %v681
    %702 = vmatmul.f32.gmra.mxu0 %v684
    %v703 = vpop.f32.mrf.mxu0
    %v704 = vadd.f32 0.0, %v703
    %705 = vdwg.mxu0
    %v707 = vsel %vm108, %v704, 0
    %709 = vmatpush.msra.mxu0 0.0
    %710 = vmatpush.msra.mxu0 0.0
    %711 = vmatpush.msra.mxu0 0.0
    %712 = vmatpush.msra.mxu0 0.0
    %713 = vmatpush.msra.mxu0 0.0
    %714 = vmatpush.msra.mxu0 0.0
    %715 = vmatpush.msra.mxu0 0.0
    %716 = vmatpush.msra.mxu0 0.0
    %717 = vmatpush.msra.mxu0 0.0
    %718 = vmatpush.msra.mxu0 0.0
    %719 = vmatpush.msra.mxu0 0.0
    %720 = vmatpush.msra.mxu0 0.0
    %721 = vmatpush.msra.mxu0 0.0
    %722 = vmatpush.msra.mxu0 0.0
    %723 = vmatpush.msra.mxu0 0.0
    %724 = vmatpush.msra.mxu0 %v103
    %725 = vmatmul.f32.gmra.mxu0 %v707
    %v726 = vpop.f32.mrf.mxu0
    %v727 = vadd.f32 0.0, %v726
    %728 = vdwg.mxu0
    %v729 = vadd.f32 %v638, %v727
    %730 = vrot.lane.b32.xlu0 %v99, 104
    %v731 = vpop.permute.xlu0 %730
    %732 = vrot.lane.b32.xlu0 %v99, 72
    %v733 = vpop.permute.xlu0 %732
    %v734 = vsel %vm108, %v731, 0
    %v736 = vsel %vm108, %v733, 0
    %738 = vmatpush.xpose.msra.mxu0 0.0
    %739 = vmatpush.xpose.msra.mxu0 0.0
    %740 = vmatpush.xpose.msra.mxu0 0.0
    %741 = vmatpush.xpose.msra.mxu0 0.0
    %742 = vmatpush.xpose.msra.mxu0 0.0
    %743 = vmatpush.xpose.msra.mxu0 0.0
    %744 = vmatpush.xpose.msra.mxu0 0.0
    %745 = vmatpush.xpose.msra.mxu0 0.0
    %746 = vmatpush.xpose.msra.mxu0 0.0
    %747 = vmatpush.xpose.msra.mxu0 0.0
    %748 = vmatpush.xpose.msra.mxu0 0.0
    %749 = vmatpush.xpose.msra.mxu0 0.0
    %750 = vmatpush.xpose.msra.mxu0 0.0
    %751 = vmatpush.xpose.msra.mxu0 0.0
    %752 = vmatpush.xpose.msra.mxu0 0.0
    %753 = vmatpush.xpose.msra.mxu0 %v736
    %754 = vmatmul.f32.gmra.mxu0 %v734
    %v755 = vpop.f32.mrf.mxu0
    %v756 = vadd.f32 0.0, %v755
    %757 = vdwg.mxu0
    %v758 = vmul.f32 %v756, 0.35355338
    %v759 = vsel %vm108, %v758, -inf
    %760 = vmax.xlane.f32.xlu0 %v759
    %v761 = vpop.xlane.xlu0 %760
    %v762 = vsub.f32 %v758, %v761
    %v763 = vmul.f32 %v762, 1.442695
    %v764 = vpow.pop %v763
    %v765 = vsel %vm108, %v764, 0.0
    %766 = vadd.xlane.f32.xlu0 %v765
    %v767 = vpop.xlane.xlu0 %766
    %v768 = vrcp.pop %v767
    %v769 = vmul.f32 %v764, %v768
    %770 = vrot.lane.b32.xlu0 %v99, 40
    %v771 = vpop.permute.xlu0 %770
    %v774 = vsel %vm108, %v769, 0
    %776 = vmatpush.msra.mxu0 0.0
    %777 = vmatpush.msra.mxu0 0.0
    %778 = vmatpush.msra.mxu0 0.0
    %779 = vmatpush.msra.mxu0 0.0
    %780 = vmatpush.msra.mxu0 0.0
    %781 = vmatpush.msra.mxu0 0.0
    %782 = vmatpush.msra.mxu0 0.0
    %783 = vmatpush.msra.mxu0 0.0
    %784 = vmatpush.msra.mxu0 0.0
    %785 = vmatpush.msra.mxu0 0.0
    %786 = vmatpush.msra.mxu0 0.0
    %787 = vmatpush.msra.mxu0 0.0
    %788 = vmatpush.msra.mxu0 0.0
    %789 = vmatpush.msra.mxu0 0.0
    %790 = vmatpush.msra.mxu0 0.0
    %791 = vmatpush.msra.mxu0 %v771
    %792 = vmatmul.f32.gmra.mxu0 %v774
    %v793 = vpop.f32.mrf.mxu0
    %v794 = vadd.f32 0.0, %v793
    %795 = vdwg.mxu0
    %v797 = vsel %vm108, %v794, 0
    %799 = vmatpush.msra.mxu0 0.0
    %800 = vmatpush.msra.mxu0 0.0
    %801 = vmatpush.msra.mxu0 0.0
    %802 = vmatpush.msra.mxu0 0.0
    %803 = vmatpush.msra.mxu0 0.0
    %804 = vmatpush.msra.mxu0 0.0
    %805 = vmatpush.msra.mxu0 0.0
    %806 = vmatpush.msra.mxu0 0.0
    %807 = vmatpush.msra.mxu0 0.0
    %808 = vmatpush.msra.mxu0 0.0
    %809 = vmatpush.msra.mxu0 0.0
    %810 = vmatpush.msra.mxu0 0.0
    %811 = vmatpush.msra.mxu0 0.0
    %812 = vmatpush.msra.mxu0 0.0
    %813 = vmatpush.msra.mxu0 0.0
    %814 = vmatpush.msra.mxu0 %v104
    %815 = vmatmul.f32.gmra.mxu0 %v797
    %v816 = vpop.f32.mrf.mxu0
    %v817 = vadd.f32 0.0, %v816
    %818 = vdwg.mxu0
    %v819 = vadd.f32 %v729, %v817
    %v820 = vld [vmem:[%s4] sm:$0x1]
    %v822 = vperm.slane %v820, 0
    %v824 = vadd.f32 %v462, %v822
    %v825 = vadd.f32 %v819, %v822
    %v826 = vadd.f32 %v61, %v824
    %v827 = vadd.f32 %v62, %v825
    %v828 = vsel %vm71, %v826, 0.0
    %829 = vadd.xlane.f32.xlu0 %v828
    %v830 = vpop.xlane.xlu0 %829
    %v831 = vsel %vm71, %v827, 0.0
    %832 = vadd.xlane.f32.xlu0 %v831
    %v833 = vpop.xlane.xlu0 %832
    %v834 = vrcp.pop 32.0
    %v835 = vmul.f32 32.0, %v834
    %v836 = vsub.f32 1.0, %v835
    %v837 = vmul.f32 %v834, %v836
    %v838 = vadd.f32 %v834, %v837
    %vm839 = vweird.f32 %v834
    %v840 = vsel %vm839, %v834, %v838
    %v841 = vmul.f32 %v830, %v840
    %v842 = vmul.f32 %v833, %v840
    %v843 = vmul.f32 %v826, %v826
    %v844 = vmul.f32 %v827, %v827
    %v845 = vsel %vm71, %v843, 0.0
    %846 = vadd.xlane.f32.xlu0 %v845
    %v847 = vpop.xlane.xlu0 %846
    %v848 = vsel %vm71, %v844, 0.0
    %849 = vadd.xlane.f32.xlu0 %v848
    %v850 = vpop.xlane.xlu0 %849
    %v851 = vmul.f32 %v847, %v840
    %v852 = vmul.f32 %v850, %v840
    %v853 = vmul.f32 %v841, %v841
    %v854 = vmul.f32 %v842, %v842
    %v855 = vsub.f32 %v851, %v853
    %v856 = vsub.f32 %v852, %v854
    %v857 = vsub.f32 %v826, %v841
    %v858 = vsub.f32 %v827, %v842
    %v859 = vadd.f32 %v855, 1e-05
    %v860 = vadd.f32 %v856, 1e-05
    %v861 = vrsqrt.pop %v859
    %v862 = vmul.f32 %v861, %v859
    %v863 = vmul.f32 %v862, %v861
    %v864 = vmul.f32 0.5, %v863
    %v865 = vsub.f32 1.5, %v864
    %v866 = vmul.f32 %v861, %v865
    %vm867 = vweird.f32 %v859
    %vm868 = vweird.f32 %v861
    %vm869 = vmor %vm867, %vm868
    %v870 = vsel %vm869, %v861, %v866
    %v871 = vrsqrt.pop %v860
    %v872 = vmul.f32 %v871, %v860
    %v873 = vmul.f32 %v872, %v871
    %v874 = vmul.f32 0.5, %v873
    %v875 = vsub.f32 1.5, %v874
    %v876 = vmul.f32 %v871, %v875
    %vm877 = vweird.f32 %v860
    %vm878 = vweird.f32 %v871
    %vm879 = vmor %vm877, %vm878
    %v880 = vsel %vm879, %v871, %v876
    %v881 = vmul.f32 %v857, %v870
    %v882 = vmul.f32 %v858, %v880
    %v883 = vld [vmem:[%s5] sm:$0x1]
    %v885 = vperm.slane %v883, 0
    %v887 = vmul.f32 %v881, %v885
    %v888 = vmul.f32 %v882, %v885
    %v889 = vld [vmem:[%s6] sm:$0x1]
    %v891 = vperm.slane %v889, 0
    %v893 = vadd.f32 %v887, %v891
    %v894 = vadd.f32 %v888, %v891
    %v895 = vld [vmem:[%s7] sm:$0xff]
    %v896 = vld [vmem:[%s7 + $0x8] sm:$0xff]
    %v897 = vld [vmem:[%s7 + $0x10] sm:$0xff]
    %v898 = vld [vmem:[%s7 + $0x18] sm:$0xff]
    %v899 = vld [vmem:[%s8] sm:$0x1]
    %v901 = vperm.slane %v899, 0
    %v904 = vsel %vm71, %v893, 0
    %v907 = vsel %vm71, %v894, 0
    %909 = vmatpush.msra.mxu0 0.0
    %910 = vmatpush.msra.mxu0 0.0
    %911 = vmatpush.msra.mxu0 0.0
    %912 = vmatpush.msra.mxu0 0.0
    %913 = vmatpush.msra.mxu0 0.0
    %914 = vmatpush.msra.mxu0 0.0
    %915 = vmatpush.msra.mxu0 0.0
    %916 = vmatpush.msra.mxu0 0.0
    %917 = vmatpush.msra.mxu0 0.0
    %918 = vmatpush.msra.mxu0 0.0
    %919 = vmatpush.msra.mxu0 0.0
    %920 = vmatpush.msra.mxu0 0.0
    %921 = vmatpush.msra.mxu0 %v898
    %922 = vmatpush.msra.mxu0 %v897
    %923 = vmatpush.msra.mxu0 %v896
    %924 = vmatpush.msra.mxu0 %v895
    %925 = vmatmul.f32.gmra.mxu0 %v904
    %v926 = vpop.f32.mrf.mxu0
    %v927 = vadd.f32 %v901, %v926
    %928 = vmatmul.f32.gmra.mxu0 %v907
    %v929 = vpop.f32.mrf.mxu0
    %v930 = vadd.f32 %v901, %v929
    %931 = vdwg.mxu0
    %v932 = vmax.f32 %v927, 0.0
    %v933 = vmax.f32 %v930, 0.0
    %v934 = vld [vmem:[%s9] sm:$0xff]
    %v935 = vld [vmem:[%s9 + $0x8] sm:$0xff]
    %v936 = vld [vmem:[%s9 + $0x10] sm:$0xff]
    %v937 = vld [vmem:[%s9 + $0x18] sm:$0xff]
    %v938 = vld [vmem:[%s9 + $0x20] sm:$0xff]
    %v939 = vld [vmem:[%s9 + $0x28] sm:$0xff]
    %v940 = vld [vmem:[%s9 + $0x30] sm:$0xff]
    %v941 = vld [vmem:[%s9 + $0x38] sm:$0xff]
    %v942 = vld [vmem:[%s10] sm:$0x1]
    %v944 = vperm.slane %v942, 0
    %vm946 = vcmask 523264
    %v948 = vsel %vm946, %v932, 0
    %v951 = vsel %vm946, %v933, 0
    %953 = vmatpush.msra.mxu0 0.0
    %954 = vmatpush.msra.mxu0 0.0
    %955 = vmatpush.msra.mxu0 0.0
    %956 = vmatpush.msra.mxu0 0.0
    %957 = vmatpush.msra.mxu0 0.0
    %958 = vmatpush.msra.mxu0 0.0
    %959 = vmatpush.msra.mxu0 0.0
    %960 = vmatpush.msra.mxu0 0.0
    %961 = vmatpush.msra.mxu0 %v941
    %962 = vmatpush.msra.mxu0 %v940
    %963 = vmatpush.msra.mxu0 %v939
    %964 = vmatpush.msra.mxu0 %v938
    %965 = vmatpush.msra.mxu0 %v937
    %966 = vmatpush.msra.mxu0 %v936
    %967 = vmatpush.msra.mxu0 %v935
    %968 = vmatpush.msra.mxu0 %v934
    %969 = vmatmul.f32.gmra.mxu0 %v948
    %v970 = vpop.f32.mrf.mxu0
    %v971 = vadd.f32 %v944, %v970
    %972 = vmatmul.f32.gmra.mxu0 %v951
    %v973 = vpop.f32.mrf.mxu0
    %v974 = vadd.f32 %v944, %v973
    %975 = vdwg.mxu0
    %v976 = vadd.f32 %v893, %v971
    %v977 = vadd.f32 %v894, %v974
    %v978 = vsel %vm71, %v976, 0.0
    %979 = vadd.xlane.f32.xlu0 %v978
    %v980 = vpop.xlane.xlu0 %979
    %v981 = vsel %vm71, %v977, 0.0
    %982 = vadd.xlane.f32.xlu0 %v981
    %v983 = vpop.xlane.xlu0 %982
    %v984 = vmul.f32 %v980, %v840
    %v985 = vmul.f32 %v983, %v840
    %v986 = vmul.f32 %v976, %v976
    %v987 = vmul.f32 %v977, %v977
    %v988 = vsel %vm71, %v986, 0.0
    %989 = vadd.xlane.f32.xlu0 %v988
    %v990 = vpop.xlane.xlu0 %989
    %v991 = vsel %vm71, %v987, 0.0
    %992 = vadd.xlane.f32.xlu0 %v991
    %v993 = vpop.xlane.xlu0 %992
    %v994 = vmul.f32 %v990, %v840
    %v995 = vmul.f32 %v993, %v840
    %v996 = vmul.f32 %v984, %v984
    %v997 = vmul.f32 %v985, %v985
    %v998 = vsub.f32 %v994, %v996
    %v999 = vsub.f32 %v995, %v997
    %v1000 = vsub.f32 %v976, %v984
    %v1001 = vsub.f32 %v977, %v985
    %v1002 = vadd.f32 %v998, 1e-05
    %v1003 = vadd.f32 %v999, 1e-05
    %v1004 = vrsqrt.pop %v1002
    %v1005 = vmul.f32 %v1004, %v1002
    %v1006 = vmul.f32 %v1005, %v1004
    %v1007 = vmul.f32 0.5, %v1006
    %v1008 = vsub.f32 1.5, %v1007
    %v1009 = vmul.f32 %v1004, %v1008
    %vm1010 = vweird.f32 %v1002
    %vm1011 = vweird.f32 %v1004
    %vm1012 = vmor %vm1010, %vm1011
    %v1013 = vsel %vm1012, %v1004, %v1009
    %v1014 = vrsqrt.pop %v1003
    %v1015 = vmul.f32 %v1014, %v1003
    %v1016 = vmul.f32 %v1015, %v1014
    %v1017 = vmul.f32 0.5, %v1016
    %v1018 = vsub.f32 1.5, %v1017
    %v1019 = vmul.f32 %v1014, %v1018
    %vm1020 = vweird.f32 %v1003
    %vm1021 = vweird.f32 %v1014
    %vm1022 = vmor %vm1020, %vm1021
    %v1023 = vsel %vm1022, %v1014, %v1019
    %v1024 = vmul.f32 %v1000, %v1013
    %v1025 = vmul.f32 %v1001, %v1023
    %v1026 = vld [vmem:[%s11] sm:$0x1]
    %v1028 = vperm.slane %v1026, 0
    %v1030 = vmul.f32 %v1024, %v1028
    %v1031 = vmul.f32 %v1025, %v1028
    %v1032 = vld [vmem:[%s12] sm:$0x1]
    %v1034 = vperm.slane %v1032, 0
    %v1036 = vadd.f32 %v1030, %v1034
    %v1037 = vadd.f32 %v1031, %v1034
    %1038 = vst.msk [vmem:[#allocation5] sm:$0xff] %vm71, %v1036
    %1039 = vst.msk [vmem:[#allocation5 + $0x8] sm:$0xff] %vm71, %v1037
    // Predicated region
    $region58: #{tpu_custom_call.1} parent=1 // pred_check
      _
    $region59: #{tpu_custom_call.1} parent=1 // pred_check_branch
      %1041 = sbr.rel (0) target = $region61
    $region60: #{tpu_custom_call.1} parent=1 // pred_region
      %1043 = vsyncadd [#allocation4], 0
      %s1044 = sshll.u32 [#allocation5], 4
      %s1045 = int_to_ptr.vmem [resolvable:$true] %s1044
      %s1046 = sshll.u32 %s13, 4
      %s1047 = int_to_ptr.hbm [resolvable:$true] %s1046
      %1052 = dma.vmem_to_hbm [thread:$0]  %s1045, 256, %s1047, [#allocation4], 128, 128, 8
    $region61: #{tpu_custom_call.1} parent=1 // pred_fallthru
      _
    // Predicated region
    $region62: #{tpu_custom_call.1} parent=1 // pred_check
      _
    $region63: #{tpu_custom_call.1} parent=1 // pred_check_branch
      %1054 = sbr.rel (0) target = $region65
    $region64: #{tpu_custom_call.1} parent=1 // pred_region
      %1056 = dma.done [#allocation4], 256
    $region65: #{tpu_custom_call.1} parent=1 // pred_fallthru
      _
    %1057 = vsyncpa [#allocation3], 1
    %1058 = vsyncpa [#allocation4], 1

</llo_original>
